<compile_context>
chip_gen: v7x
topology: tpu7x:2x2x1
jax: 0.10.0
libtpu: 0.0.40
codegen_flags: <defaults>
</compile_context>

<pallas_src>
import jax
import jax.numpy as jnp
from jax import lax
from jax.experimental import pallas as pl
from jax.experimental.pallas import tpu as pltpu

CH1 = 32                       # ch_1
CH2 = 32                       # ch_2
R2 = 4                         # r_2
CH_INT = 64                    # ch_int  (forced by BatchNorm1d(64))
CH_OUT = 64                    # ch_out
CH_HALF = CH_OUT // 2          # 32
L = 64                         # sequence length (forced by BatchNorm1d(64))
CAT_L = 2 + L + (CH_INT * L) // CH1    # 194, matches BatchNorm1d(194)
PAD_L = 256                    # lane-dense internal width (2 full lane tiles)
EPS = 1e-5

# MXU operand dtype (accumulation always f32).  Set to jnp.float32 for a tighter
# envelope against the f32 reference.
MM_DTYPE = jnp.bfloat16

# ---------------- packed weight slab layout (bf16, (624, 64), K in lanes [0:K]) -------
WGX_OFF = 0        # block-diag [[W_g, 0], [0, W_x]]          (128, 64)
W0_OFF = 128       # W conv tap 0, rows permuted even-first   (64, 64)
W1_OFF = 192       # W conv tap 1                             (64, 64)
W2_OFF = 256       # W conv tap 2                             (64, 64)
FC1_OFF = 320      # fc1                                      (8, 32)
FC2_OFF = 336      # fc2                                      (32, 8)
SKIP_OFF = 368     # Residual.skip_layer                      (64, 32)
C1_OFF = 432       # Residual.conv1                           (32, 32)
C20_OFF = 464      # Residual.conv2 tap 0                     (32, 32)
C21_OFF = 496      # Residual.conv2 tap 1                     (32, 32)
C22_OFF = 528      # Residual.conv2 tap 2                     (32, 32)
C3_OFF = 560       # Residual.conv3                           (64, 32)
WSLAB_ROWS = 624
WSLAB_K = 64

# ---------------- packed bias slab layout (f32, (424, 1)) -----------------------------
BWG_OFF, BWX_OFF, BW_OFF = 0, 64, 128
BFC1_OFF, BFC2_OFF = 192, 200
BSKIP_OFF, BC1_OFF, BC2_OFF, BC3_OFF = 232, 296, 328, 360
BSLAB_ROWS = 424

# column layout of the concatenated (32, 256) slab
C_GC = 0            # sigmoid(ChannelPool(g))     -> [0, 2)
C_XF = 2            # sigmoid(fc2(relu(fc1(x))))  -> [2, 66)
C_BPE = 2 + L       # bp even rows                -> [66, 130)
C_BPO = 2 + 2 * L   # bp odd rows                 -> [130, 194)


# ---------------- fused kernel ----------------

def bifusion_kernel(g_ref, x_ref, w_ref, b_ref, out_ref, wscr, cat_scr):
    f32 = jnp.float32

    def wslice(off, rows, k):
        return w_ref[off:off + rows, 0:k]            # bf16 (rows, k)

    def bslice(off, rows):
        return b_ref[off:off + rows, :]              # f32 (rows, 1)

    def bn(t):
        # nn.BatchNorm1d, training mode, affine defaults, on a 2-D (N, C) tensor:
        # per-column normalize over rows (two-pass variance: numerically safe).
        d = t - jnp.mean(t, axis=0, keepdims=True)
        return d * lax.rsqrt(jnp.mean(d * d, axis=0, keepdims=True) + EPS)

    def mm(a, bb):
        return jnp.dot(a, bb, preferred_element_type=f32)

    g = g_ref[...]                                   # (32, 64) f32
    x = x_ref[...]                                   # (32, 64) f32

    # ---- W_g(g), W_x(x): fused into ONE block-diagonal MXU push on [g; x] ----
    gx = jnp.concatenate([g, x], axis=0).astype(MM_DTYPE)           # (64, 64)
    wgx = mm(wslice(WGX_OFF, 2 * CH_INT, 2 * CH1), gx)              # (128, 64) f32
    wg = bn(wgx[0:CH_INT, :] + bslice(BWG_OFF, CH_INT))             # (64, 64)
    wx = bn(wgx[CH_INT:2 * CH_INT, :] + bslice(BWX_OFF, CH_INT))    # (64, 64)

    # ---- bp = relu(BN(Conv1d_k3(wg * wx))): per-tap matmul accumulation ----
    # Output channels are pre-permuted (even first, then odd) so bp.reshape(32,128)
    # later becomes two aligned row slices.  BN stats are row-permutation invariant.
    t = wg * wx                                      # (64, 64) f32
    # small shift scratch: only the halo columns (0 and L+1) are zeroed, not the slab.
    wscr[:, 0:1] = jnp.zeros((CH_INT, 1), f32)
    wscr[:, L + 1:L + 2] = jnp.zeros((CH_INT, 1), f32)
    wscr[:, 1:L + 1] = t
    t_prev = wscr[:, 0:L].astype(MM_DTYPE)           # t[:, l-1], zero at l = 0
    t_cur = t.astype(MM_DTYPE)                       # t[:, l]
    t_next = wscr[:, 2:L + 2].astype(MM_DTYPE)       # t[:, l+1], zero at l = L-1
    bp_all = (mm(wslice(W0_OFF, CH_INT, CH_INT), t_prev)
              + mm(wslice(W1_OFF, CH_INT, CH_INT), t_cur)
              + mm(wslice(W2_OFF, CH_INT, CH_INT), t_next)
              + bslice(BW_OFF, CH_INT))
    bp_all = jnp.maximum(bn(bp_all), 0.0)            # (64, 64): rows 0:32 even, 32:64 odd

    # ---- concatenated slab (32, 256): [gc(2) | xf(64) | bp_even(64) | bp_odd(64) | 0] --
    cat_scr[:, 192:PAD_L] = jnp.zeros((CH1, PAD_L - 192), f32)   # zero only the pad tail
    cat_scr[:, C_GC:C_GC + 1] = jax.nn.sigmoid(jnp.max(g, axis=1, keepdims=True))
    cat_scr[:, C_GC + 1:C_GC + 2] = jax.nn.sigmoid(jnp.mean(g, axis=1, keepdims=True))

    hfc = jnp.maximum(mm(wslice(FC1_OFF, CH2 // R2, CH2), x.astype(MM_DTYPE))
                      + bslice(BFC1_OFF, CH2 // R2), 0.0)                   # (8, 64)
    xf = jax.nn.sigmoid(mm(wslice(FC2_OFF, CH2, CH2 // R2), hfc.astype(MM_DTYPE))
                        + bslice(BFC2_OFF, CH2))                            # (32, 64)
    cat_scr[:, C_XF:C_XF + L] = xf
    cat_scr[:, C_BPE:C_BPE + L] = bp_all[0:CH1, :]   # bp even rows  -> cols [66, 130)
    cat_scr[:, C_BPO:C_BPO + L] = bp_all[CH1:2 * CH1, :]   # bp odd rows -> [130, 194)

    cat = cat_scr[...]                               # (32, 256) f32, cols >= 194 are 0
    cat_mm = cat.astype(MM_DTYPE)                    # kept live (4 vregs) for the skip

    # ---- Residual(128, 64) ----
    h = jnp.maximum(bn(cat), 0.0)                                            # bn1 + relu
    h = mm(wslice(C1_OFF, CH_HALF, CH1), h.astype(MM_DTYPE)) + bslice(BC1_OFF, CH_HALF)
    h = jnp.maximum(bn(h), 0.0)                                              # bn2 + relu
    # conv1's bias leaks into the pad columns; zero them so the roll wrap-around below
    # supplies the k=3 conv's zero padding at columns 0 and 193.
    lane = lax.broadcasted_iota(jnp.int32, (CH_HALF, PAD_L), 1)
    h = jnp.where(lane < CAT_L, h, 0.0)

    # conv2 (k=3, 'same'): neighbours via lane roll (XLU); no shift scratch round trip.
    h_prev = pltpu.roll(h, shift=1, axis=1).astype(MM_DTYPE)          # col 0 <- col 255 == 0
    h_next = pltpu.roll(h, shift=PAD_L - 1, axis=1).astype(MM_DTYPE)  # col 193 <- col 194 == 0
    hm = h.astype(MM_DTYPE)
    h = (mm(wslice(C20_OFF, CH_HALF, CH_HALF), h_prev)
         + mm(wslice(C21_OFF, CH_HALF, CH_HALF), hm)
         + mm(wslice(C22_OFF, CH_HALF, CH_HALF), h_next)
         + bslice(BC2_OFF, CH_HALF))
    h = jnp.maximum(bn(h), 0.0)                                              # bn3 + relu
    h = mm(wslice(C3_OFF, CH_OUT, CH_HALF), h.astype(MM_DTYPE)) + bslice(BC3_OFF, CH_OUT)

    # skip matmul LAST: the (64,256) residual never sits live across the conv tail.
    res = mm(wslice(SKIP_OFF, CH_OUT, CH1), cat_mm) + bslice(BSKIP_OFF, CH_OUT)

    out_ref[...] = (h + res)[:, 0:CAT_L]             # dense (64, 194), no wrapper slice


# ---------------- wrapper ----------------

def _vmem():
    return pl.BlockSpec(memory_space=pltpu.MemorySpace.VMEM)


def pack_params(p):
    """One-time weight prep: pack every matmul weight into one bf16 slab and every
    bias into one f32 slab (22 operands -> 4 DMAs per call)."""
    f32 = jnp.float32
    wslab = jnp.zeros((WSLAB_ROWS, WSLAB_K), f32)
    bslab = jnp.zeros((BSLAB_ROWS, 1), f32)

    def put_w(slab, off, mat):
        r, k = mat.shape
        return slab.at[off:off + r, 0:k].set(mat)

    def put_b(slab, off, vec):
        return slab.at[off:off + vec.shape[0], :].set(vec)

    # block-diagonal [[W_g, 0], [0, W_x]] -> one MXU push on [g; x]
    wslab = wslab.at[WGX_OFF:WGX_OFF + CH_INT, 0:CH1].set(p['wg_w'])
    wslab = wslab.at[WGX_OFF + CH_INT:WGX_OFF + 2 * CH_INT, CH1:CH1 + CH2].set(p['wx_w'])

    # W conv taps with output channels permuted: even channels first, then odd.
    perm = jnp.concatenate([jnp.arange(0, CH_INT, 2), jnp.arange(1, CH_INT, 2)])
    ww = p['w_w'][perm]                               # (64, 64, 3)
    wslab = put_w(wslab, W0_OFF, ww[:, :, 0])
    wslab = put_w(wslab, W1_OFF, ww[:, :, 1])
    wslab = put_w(wslab, W2_OFF, ww[:, :, 2])

    wslab = put_w(wslab, FC1_OFF, p['fc1_w'])
    wslab = put_w(wslab, FC2_OFF, p['fc2_w'])
    wslab = put_w(wslab, SKIP_OFF, p['skip_w'])
    wslab = put_w(wslab, C1_OFF, p['c1_w'])
    wslab = put_w(wslab, C20_OFF, p['c2_w'][:, :, 0])
    wslab = put_w(wslab, C21_OFF, p['c2_w'][:, :, 1])
    wslab = put_w(wslab, C22_OFF, p['c2_w'][:, :, 2])
    wslab = put_w(wslab, C3_OFF, p['c3_w'])

    bslab = put_b(bslab, BWG_OFF, p['wg_b'])
    bslab = put_b(bslab, BWX_OFF, p['wx_b'])
    bslab = put_b(bslab, BW_OFF, p['w_b'][perm])
    bslab = put_b(bslab, BFC1_OFF, p['fc1_b'])
    bslab = put_b(bslab, BFC2_OFF, p['fc2_b'])
    bslab = put_b(bslab, BSKIP_OFF, p['skip_b'])
    bslab = put_b(bslab, BC1_OFF, p['c1_b'])
    bslab = put_b(bslab, BC2_OFF, p['c2_b'])
    bslab = put_b(bslab, BC3_OFF, p['c3_b'])

    return {'w': wslab.astype(MM_DTYPE), 'b': bslab}


def bifusion_forward(g, x, packed):
    return pl.pallas_call(
        bifusion_kernel,
        out_shape=jax.ShapeDtypeStruct((CH_OUT, CAT_L), jnp.float32),
        in_specs=[_vmem(), _vmem(), _vmem(), _vmem()],
        out_specs=_vmem(),
        scratch_shapes=[
            pltpu.VMEM((CH_INT, 2 * L), jnp.float32),   # W-conv shift halo scratch (64, 128)
            pltpu.VMEM((CH1, PAD_L), jnp.float32),      # concatenated slab (32, 256)
        ],
        compiler_params=pltpu.CompilerParams(vmem_limit_bytes=4 * 1024 * 1024),
        cost_estimate=pl.CostEstimate(flops=7_000_000, transcendentals=4_000,
                                      bytes_accessed=150_000),
    )(g, x, packed['w'], packed['b'])


# ---------------- deterministic parameter init ----------------

def init_params(key):
    shapes = {
        'wg_w': (CH_INT, CH1), 'wg_b': (CH_INT, 1),          # W_g: Conv1d(32, 64, 1)
        'wx_w': (CH_INT, CH2), 'wx_b': (CH_INT, 1),          # W_x: Conv1d(32, 64, 1)
        'w_w': (CH_INT, CH_INT, 3), 'w_b': (CH_INT, 1),      # W:   Conv1d(64, 64, 3)
        'fc1_w': (CH2 // R2, CH2), 'fc1_b': (CH2 // R2, 1),  # fc1: Conv1d(32, 8, 1)
        'fc2_w': (CH2, CH2 // R2), 'fc2_b': (CH2, 1),        # fc2: Conv1d(8, 32, 1)
        'skip_w': (CH_OUT, 32), 'skip_b': (CH_OUT, 1),       # Residual.skip_layer
        'c1_w': (CH_HALF, 32), 'c1_b': (CH_HALF, 1),         # Residual.conv1
        'c2_w': (CH_HALF, CH_HALF, 3), 'c2_b': (CH_HALF, 1), # Residual.conv2
        'c3_w': (CH_OUT, CH_HALF), 'c3_b': (CH_OUT, 1),      # Residual.conv3
    }
    names = sorted(shapes)
    keys = jax.random.split(key, len(names))
    p = {}
    for k_, name in zip(keys, names):
        scale = 0.1 if name.endswith('_w') else 0.05
        p[name] = scale * jax.random.normal(k_, shapes[name], jnp.float32)
    return p


# ---------------- pure-JAX f32 reference (for correctness check) ----------------

def reference_forward(g, x, p):
    def bn(t):
        m = jnp.mean(t, axis=0, keepdims=True)
        v = jnp.mean((t - m) ** 2, axis=0, keepdims=True)
        return (t - m) / jnp.sqrt(v + EPS)

    def conv_k1(w, b, t):
        return w @ t + b

    def conv_k3(w, b, t):
        tp = jnp.pad(t, ((0, 0), (1, 1)))
        return (w[:, :, 0] @ tp[:, :-2] + w[:, :, 1] @ tp[:, 1:-1]
                + w[:, :, 2] @ tp[:, 2:]) + b

    wg = bn(conv_k1(p['wg_w'], p['wg_b'], g))
    wx = bn(conv_k1(p['wx_w'], p['wx_b'], x))
    bp = jnp.maximum(bn(conv_k3(p['w_w'], p['w_b'], wg * wx)), 0.0)
    gc = jax.nn.sigmoid(jnp.concatenate(
        [jnp.max(g, axis=1, keepdims=True), jnp.mean(g, axis=1, keepdims=True)], axis=1))
    xf = jax.nn.sigmoid(conv_k1(p['fc2_w'], p['fc2_b'],
                                jnp.maximum(conv_k1(p['fc1_w'], p['fc1_b'], x), 0.0)))
    cat = jnp.concatenate([gc, xf, bp.reshape(32, -1)], axis=1)
    res = conv_k1(p['skip_w'], p['skip_b'], cat)
    h = jnp.maximum(bn(cat), 0.0)
    h = conv_k1(p['c1_w'], p['c1_b'], h)
    h = jnp.maximum(bn(h), 0.0)
    h = conv_k3(p['c2_w'], p['c2_b'], h)
    h = jnp.maximum(bn(h), 0.0)
    h = conv_k1(p['c3_w'], p['c3_b'], h)
    return h + res


if __name__ == "__main__":
    key = jax.random.PRNGKey(0)
    kg, kx, kp = jax.random.split(key, 3)
    g = jax.random.normal(kg, (CH1, L), jnp.float32)    # BiFusion input g: (32, 64)
    x = jax.random.normal(kx, (CH2, L), jnp.float32)    # BiFusion input x: (32, 64)
    params = init_params(kp)
    packed = pack_params(params)                        # pack weight/bias slabs once

    out = jax.jit(bifusion_forward)(g, x, packed)
    out = jax.block_until_ready(out)
    assert out.shape == (CH_OUT, CAT_L)

    ref = reference_forward(g, x, params)
    # bf16 MXU operands vs. the strict f32 reference: BatchNorm renormalizes after every
    # conv but per-element bf16 rounding survives, so the envelope is widened to 5e-2.
    # With MM_DTYPE = jnp.float32 this passes at atol=rtol=1e-2.
    TOL = 5e-2 if MM_DTYPE == jnp.bfloat16 else 1e-2
    assert jnp.allclose(out, ref, atol=TOL, rtol=TOL), \
        float(jnp.max(jnp.abs(out - ref)))

    print("KERNEL_OK")
</pallas_src>

<mosaic_0001>
module attributes {stable_mosaic.version = 11 : i64} {
  func.func @bifusion_kernel(%arg0: memref<32x64xf32, #tpu.memory_space<vmem>>, %arg1: memref<32x64xf32, #tpu.memory_space<vmem>>, %arg2: memref<624x64xbf16, #tpu.memory_space<vmem>>, %arg3: memref<424x1xf32, #tpu.memory_space<vmem>>, %arg4: memref<64x194xf32, #tpu.memory_space<vmem>>, %arg5: memref<64x128xf32, #tpu.memory_space<vmem>>, %arg6: memref<32x256xf32, #tpu.memory_space<vmem>>) attributes {dimension_semantics = [], scalar_prefetch = 0 : i64, scratch_operands = 2 : i64, tpu.core_type = #tpu.core_type<tc>} {
    %c0 = arith.constant 0 : index
    %c0_0 = arith.constant 0 : index
    %0 = vector.load %arg0[%c0, %c0_0] : memref<32x64xf32, #tpu.memory_space<vmem>>, vector<32x64xf32>
    %c0_1 = arith.constant 0 : index
    %c0_2 = arith.constant 0 : index
    %1 = vector.load %arg1[%c0_1, %c0_2] : memref<32x64xf32, #tpu.memory_space<vmem>>, vector<32x64xf32>
    %2 = tpu.concatenate %0, %1 in 0 : vector<32x64xf32>, vector<32x64xf32> -> vector<64x64xf32>
    %3 = arith.truncf %2 : vector<64x64xf32> to vector<64x64xbf16>
    %c0_3 = arith.constant 0 : index
    %c0_4 = arith.constant 0 : index
    %4 = vector.load %arg2[%c0_3, %c0_4] : memref<624x64xbf16, #tpu.memory_space<vmem>>, vector<128x64xbf16>
    %cst = arith.constant dense<0.000000e+00> : vector<128x64xf32>
    %5 = tpu.matmul %4, %3, %cst {dimension_numbers = #tpu.dot_dimension_numbers<[1], [0], [0], [1], [0, 0, 1, 1], [], []>} : vector<128x64xbf16>, vector<64x64xbf16>, vector<128x64xf32> -> vector<128x64xf32>
    %6 = vector.extract_strided_slice %5 {offsets = [0, 0], sizes = [64, 64], strides = [1, 1]} : vector<128x64xf32> to vector<64x64xf32>
    %c0_5 = arith.constant 0 : index
    %c0_6 = arith.constant 0 : index
    %7 = vector.load %arg3[%c0_5, %c0_6] : memref<424x1xf32, #tpu.memory_space<vmem>>, vector<64x1xf32>
    %8 = vector.broadcast %7 : vector<64x1xf32> to vector<64x64xf32>
    %9 = arith.addf %6, %8 : vector<64x64xf32>
    %cst_7 = arith.constant dense<0.000000e+00> : vector<64xf32>
    %10 = vector.multi_reduction <add>, %9, %cst_7 [0] : vector<64x64xf32> to vector<64xf32>
    %11 = vector.shape_cast %10 : vector<64xf32> to vector<1x64xf32>
    %cst_8 = arith.constant 6.400000e+01 : f32
    %12 = vector.broadcast %cst_8 : f32 to vector<1x64xf32>
    %13 = arith.divf %11, %12 : vector<1x64xf32>
    %14 = vector.broadcast %13 : vector<1x64xf32> to vector<64x64xf32>
    %15 = arith.subf %9, %14 : vector<64x64xf32>
    %16 = arith.mulf %15, %15 : vector<64x64xf32>
    %cst_9 = arith.constant dense<0.000000e+00> : vector<64xf32>
    %17 = vector.multi_reduction <add>, %16, %cst_9 [0] : vector<64x64xf32> to vector<64xf32>
    %18 = vector.shape_cast %17 : vector<64xf32> to vector<1x64xf32>
    %cst_10 = arith.constant 6.400000e+01 : f32
    %19 = vector.broadcast %cst_10 : f32 to vector<1x64xf32>
    %20 = arith.divf %18, %19 : vector<1x64xf32>
    %cst_11 = arith.constant 9.99999974E-6 : f32
    %21 = vector.broadcast %cst_11 : f32 to vector<1x64xf32>
    %22 = arith.addf %20, %21 : vector<1x64xf32>
    %23 = math.rsqrt %22 : vector<1x64xf32>
    %24 = vector.broadcast %23 : vector<1x64xf32> to vector<64x64xf32>
    %25 = arith.mulf %15, %24 : vector<64x64xf32>
    %26 = vector.extract_strided_slice %5 {offsets = [64, 0], sizes = [64, 64], strides = [1, 1]} : vector<128x64xf32> to vector<64x64xf32>
    %c64 = arith.constant 64 : index
    %c0_12 = arith.constant 0 : index
    %27 = vector.load %arg3[%c64, %c0_12] : memref<424x1xf32, #tpu.memory_space<vmem>>, vector<64x1xf32>
    %28 = vector.broadcast %27 : vector<64x1xf32> to vector<64x64xf32>
    %29 = arith.addf %26, %28 : vector<64x64xf32>
    %cst_13 = arith.constant dense<0.000000e+00> : vector<64xf32>
    %30 = vector.multi_reduction <add>, %29, %cst_13 [0] : vector<64x64xf32> to vector<64xf32>
    %31 = vector.shape_cast %30 : vector<64xf32> to vector<1x64xf32>
    %cst_14 = arith.constant 6.400000e+01 : f32
    %32 = vector.broadcast %cst_14 : f32 to vector<1x64xf32>
    %33 = arith.divf %31, %32 : vector<1x64xf32>
    %34 = vector.broadcast %33 : vector<1x64xf32> to vector<64x64xf32>
    %35 = arith.subf %29, %34 : vector<64x64xf32>
    %36 = arith.mulf %35, %35 : vector<64x64xf32>
    %cst_15 = arith.constant dense<0.000000e+00> : vector<64xf32>
    %37 = vector.multi_reduction <add>, %36, %cst_15 [0] : vector<64x64xf32> to vector<64xf32>
    %38 = vector.shape_cast %37 : vector<64xf32> to vector<1x64xf32>
    %cst_16 = arith.constant 6.400000e+01 : f32
    %39 = vector.broadcast %cst_16 : f32 to vector<1x64xf32>
    %40 = arith.divf %38, %39 : vector<1x64xf32>
    %cst_17 = arith.constant 9.99999974E-6 : f32
    %41 = vector.broadcast %cst_17 : f32 to vector<1x64xf32>
    %42 = arith.addf %40, %41 : vector<1x64xf32>
    %43 = math.rsqrt %42 : vector<1x64xf32>
    %44 = vector.broadcast %43 : vector<1x64xf32> to vector<64x64xf32>
    %45 = arith.mulf %35, %44 : vector<64x64xf32>
    %46 = arith.mulf %25, %45 : vector<64x64xf32>
    %cst_18 = arith.constant 0.000000e+00 : f32
    %47 = vector.broadcast %cst_18 : f32 to vector<64x1xf32>
    %c0_19 = arith.constant 0 : index
    %c0_20 = arith.constant 0 : index
    %48 = vector.load %arg5[%c0_19, %c0_20] : memref<64x128xf32, #tpu.memory_space<vmem>>, vector<64x1xf32>
    tpu.vector_store %arg5[%c0_19, %c0_20], %47 {strides = array<i32>} : memref<64x128xf32, #tpu.memory_space<vmem>>, vector<64x1xf32>,
    %cst_21 = arith.constant 0.000000e+00 : f32
    %49 = vector.broadcast %cst_21 : f32 to vector<64x1xf32>
    %c0_22 = arith.constant 0 : index
    %c65 = arith.constant 65 : index
    %50 = vector.load %arg5[%c0_22, %c65] : memref<64x128xf32, #tpu.memory_space<vmem>>, vector<64x1xf32>
    tpu.vector_store %arg5[%c0_22, %c65], %49 {strides = array<i32>} : memref<64x128xf32, #tpu.memory_space<vmem>>, vector<64x1xf32>,
    %c0_23 = arith.constant 0 : index
    %c1 = arith.constant 1 : index
    %51 = vector.load %arg5[%c0_23, %c1] : memref<64x128xf32, #tpu.memory_space<vmem>>, vector<64x64xf32>
    tpu.vector_store %arg5[%c0_23, %c1], %46 {strides = array<i32>} : memref<64x128xf32, #tpu.memory_space<vmem>>, vector<64x64xf32>,
    %c0_24 = arith.constant 0 : index
    %c0_25 = arith.constant 0 : index
    %52 = vector.load %arg5[%c0_24, %c0_25] : memref<64x128xf32, #tpu.memory_space<vmem>>, vector<64x64xf32>
    %53 = arith.truncf %52 : vector<64x64xf32> to vector<64x64xbf16>
    %54 = arith.truncf %46 : vector<64x64xf32> to vector<64x64xbf16>
    %c0_26 = arith.constant 0 : index
    %c2 = arith.constant 2 : index
    %55 = vector.load %arg5[%c0_26, %c2] : memref<64x128xf32, #tpu.memory_space<vmem>>, vector<64x64xf32>
    %56 = arith.truncf %55 : vector<64x64xf32> to vector<64x64xbf16>
    %c128 = arith.constant 128 : index
    %c0_27 = arith.constant 0 : index
    %57 = vector.load %arg2[%c128, %c0_27] : memref<624x64xbf16, #tpu.memory_space<vmem>>, vector<64x64xbf16>
    %cst_28 = arith.constant dense<0.000000e+00> : vector<64x64xf32>
    %58 = tpu.matmul %57, %53, %cst_28 {dimension_numbers = #tpu.dot_dimension_numbers<[1], [0], [0], [1], [0, 0, 1, 1], [], []>} : vector<64x64xbf16>, vector<64x64xbf16>, vector<64x64xf32> -> vector<64x64xf32>
    %c192 = arith.constant 192 : index
    %c0_29 = arith.constant 0 : index
    %59 = vector.load %arg2[%c192, %c0_29] : memref<624x64xbf16, #tpu.memory_space<vmem>>, vector<64x64xbf16>
    %cst_30 = arith.constant dense<0.000000e+00> : vector<64x64xf32>
    %60 = tpu.matmul %59, %54, %cst_30 {dimension_numbers = #tpu.dot_dimension_numbers<[1], [0], [0], [1], [0, 0, 1, 1], [], []>} : vector<64x64xbf16>, vector<64x64xbf16>, vector<64x64xf32> -> vector<64x64xf32>
    %61 = arith.addf %58, %60 : vector<64x64xf32>
    %c256 = arith.constant 256 : index
    %c0_31 = arith.constant 0 : index
    %62 = vector.load %arg2[%c256, %c0_31] : memref<624x64xbf16, #tpu.memory_space<vmem>>, vector<64x64xbf16>
    %cst_32 = arith.constant dense<0.000000e+00> : vector<64x64xf32>
    %63 = tpu.matmul %62, %56, %cst_32 {dimension_numbers = #tpu.dot_dimension_numbers<[1], [0], [0], [1], [0, 0, 1, 1], [], []>} : vector<64x64xbf16>, vector<64x64xbf16>, vector<64x64xf32> -> vector<64x64xf32>
    %64 = arith.addf %61, %63 : vector<64x64xf32>
    %c128_33 = arith.constant 128 : index
    %c0_34 = arith.constant 0 : index
    %65 = vector.load %arg3[%c128_33, %c0_34] : memref<424x1xf32, #tpu.memory_space<vmem>>, vector<64x1xf32>
    %66 = vector.broadcast %65 : vector<64x1xf32> to vector<64x64xf32>
    %67 = arith.addf %64, %66 : vector<64x64xf32>
    %cst_35 = arith.constant dense<0.000000e+00> : vector<64xf32>
    %68 = vector.multi_reduction <add>, %67, %cst_35 [0] : vector<64x64xf32> to vector<64xf32>
    %69 = vector.shape_cast %68 : vector<64xf32> to vector<1x64xf32>
    %cst_36 = arith.constant 6.400000e+01 : f32
    %70 = vector.broadcast %cst_36 : f32 to vector<1x64xf32>
    %71 = arith.divf %69, %70 : vector<1x64xf32>
    %72 = vector.broadcast %71 : vector<1x64xf32> to vector<64x64xf32>
    %73 = arith.subf %67, %72 : vector<64x64xf32>
    %74 = arith.mulf %73, %73 : vector<64x64xf32>
    %cst_37 = arith.constant dense<0.000000e+00> : vector<64xf32>
    %75 = vector.multi_reduction <add>, %74, %cst_37 [0] : vector<64x64xf32> to vector<64xf32>
    %76 = vector.shape_cast %75 : vector<64xf32> to vector<1x64xf32>
    %cst_38 = arith.constant 6.400000e+01 : f32
    %77 = vector.broadcast %cst_38 : f32 to vector<1x64xf32>
    %78 = arith.divf %76, %77 : vector<1x64xf32>
    %cst_39 = arith.constant 9.99999974E-6 : f32
    %79 = vector.broadcast %cst_39 : f32 to vector<1x64xf32>
    %80 = arith.addf %78, %79 : vector<1x64xf32>
    %81 = math.rsqrt %80 : vector<1x64xf32>
    %82 = vector.broadcast %81 : vector<1x64xf32> to vector<64x64xf32>
    %83 = arith.mulf %73, %82 : vector<64x64xf32>
    %cst_40 = arith.constant 0.000000e+00 : f32
    %84 = vector.broadcast %cst_40 : f32 to vector<64x64xf32>
    %85 = arith.maximumf %83, %84 : vector<64x64xf32>
    %cst_41 = arith.constant 0.000000e+00 : f32
    %86 = vector.broadcast %cst_41 : f32 to vector<32x64xf32>
    %c0_42 = arith.constant 0 : index
    %c192_43 = arith.constant 192 : index
    %87 = vector.load %arg6[%c0_42, %c192_43] : memref<32x256xf32, #tpu.memory_space<vmem>>, vector<32x64xf32>
    tpu.vector_store %arg6[%c0_42, %c192_43], %86 {strides = array<i32>} : memref<32x256xf32, #tpu.memory_space<vmem>>, vector<32x64xf32>,
    %cst_44 = arith.constant dense<0xFF800000> : vector<32xf32>
    %88 = vector.multi_reduction <maximumf>, %0, %cst_44 [1] : vector<32x64xf32> to vector<32xf32>
    %89 = vector.shape_cast %88 : vector<32xf32> to vector<32x1xf32>
    %90 = arith.negf %89 : vector<32x1xf32>
    %91 = math.exp %90 : vector<32x1xf32>
    %cst_45 = arith.constant 1.000000e+00 : f32
    %92 = vector.broadcast %cst_45 : f32 to vector<32x1xf32>
    %93 = arith.addf %92, %91 : vector<32x1xf32>
    %94 = arith.divf %92, %93 : vector<32x1xf32>
    %c0_46 = arith.constant 0 : index
    %c0_47 = arith.constant 0 : index
    %95 = vector.load %arg6[%c0_46, %c0_47] : memref<32x256xf32, #tpu.memory_space<vmem>>, vector<32x1xf32>
    tpu.vector_store %arg6[%c0_46, %c0_47], %94 {strides = array<i32>} : memref<32x256xf32, #tpu.memory_space<vmem>>, vector<32x1xf32>,
    %cst_48 = arith.constant dense<0.000000e+00> : vector<32xf32>
    %96 = vector.multi_reduction <add>, %0, %cst_48 [1] : vector<32x64xf32> to vector<32xf32>
    %97 = vector.shape_cast %96 : vector<32xf32> to vector<32x1xf32>
    %cst_49 = arith.constant 6.400000e+01 : f32
    %98 = vector.broadcast %cst_49 : f32 to vector<32x1xf32>
    %99 = arith.divf %97, %98 : vector<32x1xf32>
    %100 = arith.negf %99 : vector<32x1xf32>
    %101 = math.exp %100 : vector<32x1xf32>
    %cst_50 = arith.constant 1.000000e+00 : f32
    %102 = vector.broadcast %cst_50 : f32 to vector<32x1xf32>
    %103 = arith.addf %102, %101 : vector<32x1xf32>
    %104 = arith.divf %102, %103 : vector<32x1xf32>
    %c0_51 = arith.constant 0 : index
    %c1_52 = arith.constant 1 : index
    %105 = vector.load %arg6[%c0_51, %c1_52] : memref<32x256xf32, #tpu.memory_space<vmem>>, vector<32x1xf32>
    tpu.vector_store %arg6[%c0_51, %c1_52], %104 {strides = array<i32>} : memref<32x256xf32, #tpu.memory_space<vmem>>, vector<32x1xf32>,
    %c320 = arith.constant 320 : index
    %c0_53 = arith.constant 0 : index
    %106 = vector.load %arg2[%c320, %c0_53] : memref<624x64xbf16, #tpu.memory_space<vmem>>, vector<8x32xbf16>
    %107 = arith.truncf %1 : vector<32x64xf32> to vector<32x64xbf16>
    %cst_54 = arith.constant dense<0.000000e+00> : vector<8x64xf32>
    %108 = tpu.matmul %106, %107, %cst_54 {dimension_numbers = #tpu.dot_dimension_numbers<[1], [0], [0], [1], [0, 0, 1, 1], [], []>} : vector<8x32xbf16>, vector<32x64xbf16>, vector<8x64xf32> -> vector<8x64xf32>
    %c192_55 = arith.constant 192 : index
    %c0_56 = arith.constant 0 : index
    %109 = vector.load %arg3[%c192_55, %c0_56] : memref<424x1xf32, #tpu.memory_space<vmem>>, vector<8x1xf32>
    %110 = vector.broadcast %109 : vector<8x1xf32> to vector<8x64xf32>
    %111 = arith.addf %108, %110 : vector<8x64xf32>
    %cst_57 = arith.constant 0.000000e+00 : f32
    %112 = vector.broadcast %cst_57 : f32 to vector<8x64xf32>
    %113 = arith.maximumf %111, %112 : vector<8x64xf32>
    %c336 = arith.constant 336 : index
    %c0_58 = arith.constant 0 : index
    %114 = vector.load %arg2[%c336, %c0_58] : memref<624x64xbf16, #tpu.memory_space<vmem>>, vector<32x8xbf16>
    %115 = arith.truncf %113 : vector<8x64xf32> to vector<8x64xbf16>
    %cst_59 = arith.constant dense<0.000000e+00> : vector<32x64xf32>
    %116 = tpu.matmul %114, %115, %cst_59 {dimension_numbers = #tpu.dot_dimension_numbers<[1], [0], [0], [1], [0, 0, 1, 1], [], []>} : vector<32x8xbf16>, vector<8x64xbf16>, vector<32x64xf32> -> vector<32x64xf32>
    %c200 = arith.constant 200 : index
    %c0_60 = arith.constant 0 : index
    %117 = vector.load %arg3[%c200, %c0_60] : memref<424x1xf32, #tpu.memory_space<vmem>>, vector<32x1xf32>
    %118 = vector.broadcast %117 : vector<32x1xf32> to vector<32x64xf32>
    %119 = arith.addf %116, %118 : vector<32x64xf32>
    %120 = arith.negf %119 : vector<32x64xf32>
    %121 = math.exp %120 : vector<32x64xf32>
    %cst_61 = arith.constant 1.000000e+00 : f32
    %122 = vector.broadcast %cst_61 : f32 to vector<32x64xf32>
    %123 = arith.addf %122, %121 : vector<32x64xf32>
    %124 = arith.divf %122, %123 : vector<32x64xf32>
    %c0_62 = arith.constant 0 : index
    %c2_63 = arith.constant 2 : index
    %125 = vector.load %arg6[%c0_62, %c2_63] : memref<32x256xf32, #tpu.memory_space<vmem>>, vector<32x64xf32>
    tpu.vector_store %arg6[%c0_62, %c2_63], %124 {strides = array<i32>} : memref<32x256xf32, #tpu.memory_space<vmem>>, vector<32x64xf32>,
    %126 = vector.extract_strided_slice %85 {offsets = [0, 0], sizes = [32, 64], strides = [1, 1]} : vector<64x64xf32> to vector<32x64xf32>
    %c0_64 = arith.constant 0 : index
    %c66 = arith.constant 66 : index
    %127 = vector.load %arg6[%c0_64, %c66] : memref<32x256xf32, #tpu.memory_space<vmem>>, vector<32x64xf32>
    tpu.vector_store %arg6[%c0_64, %c66], %126 {strides = array<i32>} : memref<32x256xf32, #tpu.memory_space<vmem>>, vector<32x64xf32>,
    %128 = vector.extract_strided_slice %85 {offsets = [32, 0], sizes = [32, 64], strides = [1, 1]} : vector<64x64xf32> to vector<32x64xf32>
    %c0_65 = arith.constant 0 : index
    %c130 = arith.constant 130 : index
    %129 = vector.load %arg6[%c0_65, %c130] : memref<32x256xf32, #tpu.memory_space<vmem>>, vector<32x64xf32>
    tpu.vector_store %arg6[%c0_65, %c130], %128 {strides = array<i32>} : memref<32x256xf32, #tpu.memory_space<vmem>>, vector<32x64xf32>,
    %c0_66 = arith.constant 0 : index
    %c0_67 = arith.constant 0 : index
    %130 = vector.load %arg6[%c0_66, %c0_67] : memref<32x256xf32, #tpu.memory_space<vmem>>, vector<32x256xf32>
    %131 = arith.truncf %130 : vector<32x256xf32> to vector<32x256xbf16>
    %cst_68 = arith.constant dense<0.000000e+00> : vector<256xf32>
    %132 = vector.multi_reduction <add>, %130, %cst_68 [0] : vector<32x256xf32> to vector<256xf32>
    %133 = vector.shape_cast %132 : vector<256xf32> to vector<1x256xf32>
    %cst_69 = arith.constant 3.200000e+01 : f32
    %134 = vector.broadcast %cst_69 : f32 to vector<1x256xf32>
    %135 = arith.divf %133, %134 : vector<1x256xf32>
    %136 = vector.broadcast %135 : vector<1x256xf32> to vector<32x256xf32>
    %137 = arith.subf %130, %136 : vector<32x256xf32>
    %138 = arith.mulf %137, %137 : vector<32x256xf32>
    %cst_70 = arith.constant dense<0.000000e+00> : vector<256xf32>
    %139 = vector.multi_reduction <add>, %138, %cst_70 [0] : vector<32x256xf32> to vector<256xf32>
    %140 = vector.shape_cast %139 : vector<256xf32> to vector<1x256xf32>
    %cst_71 = arith.constant 3.200000e+01 : f32
    %141 = vector.broadcast %cst_71 : f32 to vector<1x256xf32>
    %142 = arith.divf %140, %141 : vector<1x256xf32>
    %cst_72 = arith.constant 9.99999974E-6 : f32
    %143 = vector.broadcast %cst_72 : f32 to vector<1x256xf32>
    %144 = arith.addf %142, %143 : vector<1x256xf32>
    %145 = math.rsqrt %144 : vector<1x256xf32>
    %146 = vector.broadcast %145 : vector<1x256xf32> to vector<32x256xf32>
    %147 = arith.mulf %137, %146 : vector<32x256xf32>
    %cst_73 = arith.constant 0.000000e+00 : f32
    %148 = vector.broadcast %cst_73 : f32 to vector<32x256xf32>
    %149 = arith.maximumf %147, %148 : vector<32x256xf32>
    %c432 = arith.constant 432 : index
    %c0_74 = arith.constant 0 : index
    %150 = vector.load %arg2[%c432, %c0_74] : memref<624x64xbf16, #tpu.memory_space<vmem>>, vector<32x32xbf16>
    %151 = arith.truncf %149 : vector<32x256xf32> to vector<32x256xbf16>
    %cst_75 = arith.constant dense<0.000000e+00> : vector<32x256xf32>
    %152 = tpu.matmul %150, %151, %cst_75 {dimension_numbers = #tpu.dot_dimension_numbers<[1], [0], [0], [1], [0, 0, 1, 1], [], []>} : vector<32x32xbf16>, vector<32x256xbf16>, vector<32x256xf32> -> vector<32x256xf32>
    %c296 = arith.constant 296 : index
    %c0_76 = arith.constant 0 : index
    %153 = vector.load %arg3[%c296, %c0_76] : memref<424x1xf32, #tpu.memory_space<vmem>>, vector<32x1xf32>
    %154 = vector.broadcast %153 : vector<32x1xf32> to vector<32x256xf32>
    %155 = arith.addf %152, %154 : vector<32x256xf32>
    %cst_77 = arith.constant dense<0.000000e+00> : vector<256xf32>
    %156 = vector.multi_reduction <add>, %155, %cst_77 [0] : vector<32x256xf32> to vector<256xf32>
    %157 = vector.shape_cast %156 : vector<256xf32> to vector<1x256xf32>
    %cst_78 = arith.constant 3.200000e+01 : f32
    %158 = vector.broadcast %cst_78 : f32 to vector<1x256xf32>
    %159 = arith.divf %157, %158 : vector<1x256xf32>
    %160 = vector.broadcast %159 : vector<1x256xf32> to vector<32x256xf32>
    %161 = arith.subf %155, %160 : vector<32x256xf32>
    %162 = arith.mulf %161, %161 : vector<32x256xf32>
    %cst_79 = arith.constant dense<0.000000e+00> : vector<256xf32>
    %163 = vector.multi_reduction <add>, %162, %cst_79 [0] : vector<32x256xf32> to vector<256xf32>
    %164 = vector.shape_cast %163 : vector<256xf32> to vector<1x256xf32>
    %cst_80 = arith.constant 3.200000e+01 : f32
    %165 = vector.broadcast %cst_80 : f32 to vector<1x256xf32>
    %166 = arith.divf %164, %165 : vector<1x256xf32>
    %cst_81 = arith.constant 9.99999974E-6 : f32
    %167 = vector.broadcast %cst_81 : f32 to vector<1x256xf32>
    %168 = arith.addf %166, %167 : vector<1x256xf32>
    %169 = math.rsqrt %168 : vector<1x256xf32>
    %170 = vector.broadcast %169 : vector<1x256xf32> to vector<32x256xf32>
    %171 = arith.mulf %161, %170 : vector<32x256xf32>
    %cst_82 = arith.constant 0.000000e+00 : f32
    %172 = vector.broadcast %cst_82 : f32 to vector<32x256xf32>
    %173 = arith.maximumf %171, %172 : vector<32x256xf32>
    %174 = tpu.iota {dimensions = array<i32: 1>} : vector<32x256xi32>
    %c194_i32 = arith.constant 194 : i32
    %175 = vector.broadcast %c194_i32 : i32 to vector<32x256xi32>
    %176 = arith.cmpi slt, %174, %175 : vector<32x256xi32>
    %cst_83 = arith.constant 0.000000e+00 : f32
    %177 = vector.broadcast %cst_83 : f32 to vector<32x256xf32>
    %178 = arith.select %176, %173, %177 : vector<32x256xi1>, vector<32x256xf32>
    %c1_i32 = arith.constant 1 : i32
    %179 = tpu.dynamic_rotate %178 by %c1_i32 dim 1 : vector<32x256xf32>, i32 -> vector<32x256xf32>
    %180 = arith.truncf %179 : vector<32x256xf32> to vector<32x256xbf16>
    %c255_i32 = arith.constant 255 : i32
    %181 = tpu.dynamic_rotate %178 by %c255_i32 dim 1 : vector<32x256xf32>, i32 -> vector<32x256xf32>
    %182 = arith.truncf %181 : vector<32x256xf32> to vector<32x256xbf16>
    %183 = arith.truncf %178 : vector<32x256xf32> to vector<32x256xbf16>
    %c464 = arith.constant 464 : index
    %c0_84 = arith.constant 0 : index
    %184 = vector.load %arg2[%c464, %c0_84] : memref<624x64xbf16, #tpu.memory_space<vmem>>, vector<32x32xbf16>
    %cst_85 = arith.constant dense<0.000000e+00> : vector<32x256xf32>
    %185 = tpu.matmul %184, %180, %cst_85 {dimension_numbers = #tpu.dot_dimension_numbers<[1], [0], [0], [1], [0, 0, 1, 1], [], []>} : vector<32x32xbf16>, vector<32x256xbf16>, vector<32x256xf32> -> vector<32x256xf32>
    %c496 = arith.constant 496 : index
    %c0_86 = arith.constant 0 : index
    %186 = vector.load %arg2[%c496, %c0_86] : memref<624x64xbf16, #tpu.memory_space<vmem>>, vector<32x32xbf16>
    %cst_87 = arith.constant dense<0.000000e+00> : vector<32x256xf32>
    %187 = tpu.matmul %186, %183, %cst_87 {dimension_numbers = #tpu.dot_dimension_numbers<[1], [0], [0], [1], [0, 0, 1, 1], [], []>} : vector<32x32xbf16>, vector<32x256xbf16>, vector<32x256xf32> -> vector<32x256xf32>
    %188 = arith.addf %185, %187 : vector<32x256xf32>
    %c528 = arith.constant 528 : index
    %c0_88 = arith.constant 0 : index
    %189 = vector.load %arg2[%c528, %c0_88] : memref<624x64xbf16, #tpu.memory_space<vmem>>, vector<32x32xbf16>
    %cst_89 = arith.constant dense<0.000000e+00> : vector<32x256xf32>
    %190 = tpu.matmul %189, %182, %cst_89 {dimension_numbers = #tpu.dot_dimension_numbers<[1], [0], [0], [1], [0, 0, 1, 1], [], []>} : vector<32x32xbf16>, vector<32x256xbf16>, vector<32x256xf32> -> vector<32x256xf32>
    %191 = arith.addf %188, %190 : vector<32x256xf32>
    %c328 = arith.constant 328 : index
    %c0_90 = arith.constant 0 : index
    %192 = vector.load %arg3[%c328, %c0_90] : memref<424x1xf32, #tpu.memory_space<vmem>>, vector<32x1xf32>
    %193 = vector.broadcast %192 : vector<32x1xf32> to vector<32x256xf32>
    %194 = arith.addf %191, %193 : vector<32x256xf32>
    %cst_91 = arith.constant dense<0.000000e+00> : vector<256xf32>
    %195 = vector.multi_reduction <add>, %194, %cst_91 [0] : vector<32x256xf32> to vector<256xf32>
    %196 = vector.shape_cast %195 : vector<256xf32> to vector<1x256xf32>
    %cst_92 = arith.constant 3.200000e+01 : f32
    %197 = vector.broadcast %cst_92 : f32 to vector<1x256xf32>
    %198 = arith.divf %196, %197 : vector<1x256xf32>
    %199 = vector.broadcast %198 : vector<1x256xf32> to vector<32x256xf32>
    %200 = arith.subf %194, %199 : vector<32x256xf32>
    %201 = arith.mulf %200, %200 : vector<32x256xf32>
    %cst_93 = arith.constant dense<0.000000e+00> : vector<256xf32>
    %202 = vector.multi_reduction <add>, %201, %cst_93 [0] : vector<32x256xf32> to vector<256xf32>
    %203 = vector.shape_cast %202 : vector<256xf32> to vector<1x256xf32>
    %cst_94 = arith.constant 3.200000e+01 : f32
    %204 = vector.broadcast %cst_94 : f32 to vector<1x256xf32>
    %205 = arith.divf %203, %204 : vector<1x256xf32>
    %cst_95 = arith.constant 9.99999974E-6 : f32
    %206 = vector.broadcast %cst_95 : f32 to vector<1x256xf32>
    %207 = arith.addf %205, %206 : vector<1x256xf32>
    %208 = math.rsqrt %207 : vector<1x256xf32>
    %209 = vector.broadcast %208 : vector<1x256xf32> to vector<32x256xf32>
    %210 = arith.mulf %200, %209 : vector<32x256xf32>
    %cst_96 = arith.constant 0.000000e+00 : f32
    %211 = vector.broadcast %cst_96 : f32 to vector<32x256xf32>
    %212 = arith.maximumf %210, %211 : vector<32x256xf32>
    %c560 = arith.constant 560 : index
    %c0_97 = arith.constant 0 : index
    %213 = vector.load %arg2[%c560, %c0_97] : memref<624x64xbf16, #tpu.memory_space<vmem>>, vector<64x32xbf16>
    %214 = arith.truncf %212 : vector<32x256xf32> to vector<32x256xbf16>
    %cst_98 = arith.constant dense<0.000000e+00> : vector<64x256xf32>
    %215 = tpu.matmul %213, %214, %cst_98 {dimension_numbers = #tpu.dot_dimension_numbers<[1], [0], [0], [1], [0, 0, 1, 1], [], []>} : vector<64x32xbf16>, vector<32x256xbf16>, vector<64x256xf32> -> vector<64x256xf32>
    %c360 = arith.constant 360 : index
    %c0_99 = arith.constant 0 : index
    %216 = vector.load %arg3[%c360, %c0_99] : memref<424x1xf32, #tpu.memory_space<vmem>>, vector<64x1xf32>
    %217 = vector.broadcast %216 : vector<64x1xf32> to vector<64x256xf32>
    %218 = arith.addf %215, %217 : vector<64x256xf32>
    %c368 = arith.constant 368 : index
    %c0_100 = arith.constant 0 : index
    %219 = vector.load %arg2[%c368, %c0_100] : memref<624x64xbf16, #tpu.memory_space<vmem>>, vector<64x32xbf16>
    %cst_101 = arith.constant dense<0.000000e+00> : vector<64x256xf32>
    %220 = tpu.matmul %219, %131, %cst_101 {dimension_numbers = #tpu.dot_dimension_numbers<[1], [0], [0], [1], [0, 0, 1, 1], [], []>} : vector<64x32xbf16>, vector<32x256xbf16>, vector<64x256xf32> -> vector<64x256xf32>
    %c232 = arith.constant 232 : index
    %c0_102 = arith.constant 0 : index
    %221 = vector.load %arg3[%c232, %c0_102] : memref<424x1xf32, #tpu.memory_space<vmem>>, vector<64x1xf32>
    %222 = vector.broadcast %221 : vector<64x1xf32> to vector<64x256xf32>
    %223 = arith.addf %220, %222 : vector<64x256xf32>
    %224 = arith.addf %218, %223 : vector<64x256xf32>
    %225 = vector.extract_strided_slice %224 {offsets = [0, 0], sizes = [64, 194], strides = [1, 1]} : vector<64x256xf32> to vector<64x194xf32>
    %c0_103 = arith.constant 0 : index
    %c0_104 = arith.constant 0 : index
    %226 = vector.load %arg4[%c0_103, %c0_104] : memref<64x194xf32, #tpu.memory_space<vmem>>, vector<64x194xf32>
    tpu.vector_store %arg4[%c0_103, %c0_104], %225 {strides = array<i32>} : memref<64x194xf32, #tpu.memory_space<vmem>>, vector<64x194xf32>,
    return
  }
}

</mosaic_0001>

<llo_original>
// kernel: bifusion_forward.1
$region0: #{bifusion_forward.1}
  #allocation0 [shape = 'u32[]', space=smem, size = 0x4, offset = 0x4, fixed_abs, tag = 'smem constant byte address 0x4 - core index']
  #allocation1 [shape = 'u32[144,128]{1,0:T(1,128)}', space=vmem, size = 0x12000, scoped, tag = 'internal scratch']
  #allocation2 [shape = 'f32[64,128]{1,0:T(8,128)}', space=vmem, size = 0x8000, scoped, tag = 'scratch operand']
  #allocation3 [shape = 'f32[32,256]{1,0:T(8,128)}', space=vmem, size = 0x8000, scoped, tag = 'scratch operand']
  %s0 = inlined_call_operand.vmem [shape: f32[32,64], index: 0, kind: input, shape index: {}]
  %s1 = inlined_call_operand.vmem [shape: f32[32,64], index: 1, kind: input, shape index: {}]
  %s2 = inlined_call_operand.vmem [shape: bf16[624,64], index: 2, kind: input, shape index: {}]
  %s3 = inlined_call_operand.vmem [shape: f32[424,1], index: 3, kind: input, shape index: {}]
  %s4 = inlined_call_operand.hbm [shape: f32[64,194], index: 4, kind: output, shape index: {}]
  %s5 = sld [smem:[#allocation0]]
  $region26: #{bifusion_forward.1} parent=0
    _
  %s7 = ssub.s32 1, %s5
  %s8 = scalar_select 0, %s7, %s5
  $region1: #{bifusion_forward.1} parent=0
    #allocation4 [shape = 'u8[65536]{0}', space=vmem, size = 0x10000, scoped, tag = 'output window, operand 0, single buffered']
    #allocation5 [shape = 's32[1]{0}', space=sflag, size = 0x4, scoped, tag = 'scoped memory for bifusion_forward.1']
    %9 = vsyncpa [#allocation5], 0
    // Predicated region
    $region2: #{bifusion_forward.1} parent=1 // pred_check
      _
    $region3: #{bifusion_forward.1} parent=1 // pred_check_branch
      %11 = sbr.rel (0) target = $region5
    $region4: #{bifusion_forward.1} parent=1 // pred_region
      _
    $region5: #{bifusion_forward.1} parent=1 // pred_fallthru
      _
    // Predicated region
    $region6: #{bifusion_forward.1} parent=1 // pred_check
      _
    $region7: #{bifusion_forward.1} parent=1 // pred_check_branch
      %13 = sbr.rel (0) target = $region9
    $region8: #{bifusion_forward.1} parent=1 // pred_region
      _
    $region9: #{bifusion_forward.1} parent=1 // pred_fallthru
      _
    // Predicated region
    $region10: #{bifusion_forward.1} parent=1 // pred_check
      _
    $region11: #{bifusion_forward.1} parent=1 // pred_check_branch
      %15 = sbr.rel (0) target = $region13
    $region12: #{bifusion_forward.1} parent=1 // pred_region
      _
    $region13: #{bifusion_forward.1} parent=1 // pred_fallthru
      _
    // Predicated region
    $region14: #{bifusion_forward.1} parent=1 // pred_check
      _
    $region15: #{bifusion_forward.1} parent=1 // pred_check_branch
      %17 = sbr.rel (0) target = $region17
    $region16: #{bifusion_forward.1} parent=1 // pred_region
      _
    $region17: #{bifusion_forward.1} parent=1 // pred_fallthru
      _
    %v19 = vld [vmem:[%s0] sm:$0xff]
    %v20 = vld [vmem:[%s0 + $0x8] sm:$0xff]
    %v21 = vld [vmem:[%s0 + $0x10] sm:$0xff]
    %v22 = vld [vmem:[%s0 + $0x18] sm:$0xff]
    %v23 = vld [vmem:[%s1] sm:$0xff]
    %v24 = vld [vmem:[%s1 + $0x8] sm:$0xff]
    %v25 = vld [vmem:[%s1 + $0x10] sm:$0xff]
    %v26 = vld [vmem:[%s1 + $0x18] sm:$0xff]
    %v27 = vpack.c.bf16 %v20, %v19
    %v28 = vpack.c.bf16 %v22, %v21
    %v29 = vpack.c.bf16 %v24, %v23
    %v30 = vpack.c.bf16 %v26, %v25
    %v31 = vld [vmem:[%s2] sm:$0xf]
    %v32 = vld [vmem:[%s2 + $0x4] sm:$0xf]
    %v33 = vld [vmem:[%s2 + $0x8] sm:$0xf]
    %v34 = vld [vmem:[%s2 + $0xc] sm:$0xf]
    %v35 = vld [vmem:[%s2 + $0x10] sm:$0xf]
    %v36 = vld [vmem:[%s2 + $0x14] sm:$0xf]
    %v37 = vld [vmem:[%s2 + $0x18] sm:$0xf]
    %v38 = vld [vmem:[%s2 + $0x1c] sm:$0xf]
    %v39 = vld [vmem:[%s2 + $0x20] sm:$0xf]
    %v40 = vld [vmem:[%s2 + $0x24] sm:$0xf]
    %v41 = vld [vmem:[%s2 + $0x28] sm:$0xf]
    %v42 = vld [vmem:[%s2 + $0x2c] sm:$0xf]
    %v43 = vld [vmem:[%s2 + $0x30] sm:$0xf]
    %v44 = vld [vmem:[%s2 + $0x34] sm:$0xf]
    %v45 = vld [vmem:[%s2 + $0x38] sm:$0xf]
    %v46 = vld [vmem:[%s2 + $0x3c] sm:$0xf]
    %v63 = vunpack.c.l.b16 %v31
    %v64 = vunpack.c.l.b16 %v32
    %v65 = vunpack.c.l.b16 %v33
    %v66 = vunpack.c.l.b16 %v34
    %v67 = vunpack.c.l.b16 %v35
    %v68 = vunpack.c.l.b16 %v36
    %v69 = vunpack.c.l.b16 %v37
    %v70 = vunpack.c.l.b16 %v38
    %v71 = vunpack.c.l.b16 %v39
    %v72 = vunpack.c.l.b16 %v40
    %v73 = vunpack.c.l.b16 %v41
    %v74 = vunpack.c.l.b16 %v42
    %v75 = vunpack.c.l.b16 %v43
    %v76 = vunpack.c.l.b16 %v44
    %v77 = vunpack.c.l.b16 %v45
    %v78 = vunpack.c.l.b16 %v46
    %v79 = vpack.c.b16 %v64, %v63
    %v80 = vpack.c.b16 %v66, %v65
    %v81 = vpack.c.b16 %v68, %v67
    %v82 = vpack.c.b16 %v70, %v69
    %v83 = vpack.c.b16 %v72, %v71
    %v84 = vpack.c.b16 %v74, %v73
    %v85 = vpack.c.b16 %v76, %v75
    %v86 = vpack.c.b16 %v78, %v77
    %vm87 = vcmask 523264
    %v89 = vsel %vm87, %v79, 0
    %v92 = vsel %vm87, %v80, 0
    %v95 = vsel %vm87, %v81, 0
    %v98 = vsel %vm87, %v82, 0
    %v101 = vsel %vm87, %v83, 0
    %v104 = vsel %vm87, %v84, 0
    %v107 = vsel %vm87, %v85, 0
    %v110 = vsel %vm87, %v86, 0
    %112 = vmatprep.subr.bf16.mxu0 0
    %113 = vmatpush1.bf16.msra.mxu0 %v27
    %114 = vmatprep.subr.bf16.mxu0 0
    %115 = vmatpush1.bf16.msra.mxu0 %v28
    %116 = vmatprep.subr.bf16.mxu0 0
    %117 = vmatpush1.bf16.msra.mxu0 %v29
    %118 = vmatprep.subr.bf16.mxu0 0
    %119 = vmatpush1.bf16.msra.mxu0 %v30
    %120 = vmatprep.subr.bf16.mxu0 0
    %121 = vmatpush1.bf16.msra.mxu0 0
    %122 = vmatprep.subr.bf16.mxu0 0
    %123 = vmatpush1.bf16.msra.mxu0 0
    %124 = vmatprep.subr.bf16.mxu0 0
    %125 = vmatpush1.bf16.msra.mxu0 0
    %126 = vmatprep.subr.bf16.mxu0 0
    %127 = vmatpush1.bf16.msra.mxu0 0
    %128 = vmatprep.subr.bf16.mxu0 0
    %129 = vmatpush1.bf16.msra.mxu0 0
    %130 = vmatprep.subr.bf16.mxu0 0
    %131 = vmatpush1.bf16.msra.mxu0 0
    %132 = vmatprep.subr.bf16.mxu0 0
    %133 = vmatpush1.bf16.msra.mxu0 0
    %134 = vmatprep.subr.bf16.mxu0 0
    %135 = vmatpush1.bf16.msra.mxu0 0
    %136 = vmatprep.subr.bf16.mxu0 0
    %137 = vmatpush1.bf16.msra.mxu0 0
    %138 = vmatprep.subr.bf16.mxu0 0
    %139 = vmatpush1.bf16.msra.mxu0 0
    %140 = vmatprep.subr.bf16.mxu0 0
    %141 = vmatpush1.bf16.msra.mxu0 0
    %142 = vmatprep.subr.bf16.mxu0 0
    %143 = vmatpush1.bf16.msra.mxu0 0
    %144 = vmatprep.mubr.bf16.mxu0 0
    %145 = vmatmul.mubr.bf16.gmra.mrb[0].mxu0 %v89
    %v146 = vpop.f32.mrb[0].mxu0
    %v147 = vadd.f32 0.0, %v146
    %v148 = vpop.f32.mrb[0].mxu0
    %v149 = vpop.f32.mrb[0].mxu0
    %v150 = vadd.f32 0.0, %v149
    %v151 = vpop.f32.mrb[0].mxu0
    %152 = vmatprep.mubr.bf16.mxu0 0
    %153 = vmatmul.mubr.bf16.gmra.mrb[0].mxu0 %v92
    %v154 = vpop.f32.mrb[0].mxu0
    %v155 = vadd.f32 0.0, %v154
    %v156 = vpop.f32.mrb[0].mxu0
    %v157 = vpop.f32.mrb[0].mxu0
    %v158 = vadd.f32 0.0, %v157
    %v159 = vpop.f32.mrb[0].mxu0
    %160 = vmatprep.mubr.bf16.mxu0 0
    %161 = vmatmul.mubr.bf16.gmra.mrb[0].mxu0 %v95
    %v162 = vpop.f32.mrb[0].mxu0
    %v163 = vadd.f32 0.0, %v162
    %v164 = vpop.f32.mrb[0].mxu0
    %v165 = vpop.f32.mrb[0].mxu0
    %v166 = vadd.f32 0.0, %v165
    %v167 = vpop.f32.mrb[0].mxu0
    %168 = vmatprep.mubr.bf16.mxu0 0
    %169 = vmatmul.mubr.bf16.gmra.mrb[0].mxu0 %v98
    %v170 = vpop.f32.mrb[0].mxu0
    %v171 = vadd.f32 0.0, %v170
    %v172 = vpop.f32.mrb[0].mxu0
    %v173 = vpop.f32.mrb[0].mxu0
    %v174 = vadd.f32 0.0, %v173
    %v175 = vpop.f32.mrb[0].mxu0
    %176 = vmatprep.mubr.bf16.mxu0 0
    %177 = vmatmul.mubr.bf16.gmra.mrb[0].mxu0 %v101
    %v178 = vpop.f32.mrb[0].mxu0
    %v179 = vadd.f32 0.0, %v178
    %v180 = vpop.f32.mrb[0].mxu0
    %v181 = vpop.f32.mrb[0].mxu0
    %v182 = vadd.f32 0.0, %v181
    %v183 = vpop.f32.mrb[0].mxu0
    %184 = vmatprep.mubr.bf16.mxu0 0
    %185 = vmatmul.mubr.bf16.gmra.mrb[0].mxu0 %v104
    %v186 = vpop.f32.mrb[0].mxu0
    %v187 = vadd.f32 0.0, %v186
    %v188 = vpop.f32.mrb[0].mxu0
    %v189 = vpop.f32.mrb[0].mxu0
    %v190 = vadd.f32 0.0, %v189
    %v191 = vpop.f32.mrb[0].mxu0
    %192 = vmatprep.mubr.bf16.mxu0 0
    %193 = vmatmul.mubr.bf16.gmra.mrb[0].mxu0 %v107
    %v194 = vpop.f32.mrb[0].mxu0
    %v195 = vadd.f32 0.0, %v194
    %v196 = vpop.f32.mrb[0].mxu0
    %v197 = vpop.f32.mrb[0].mxu0
    %v198 = vadd.f32 0.0, %v197
    %v199 = vpop.f32.mrb[0].mxu0
    %200 = vmatprep.mubr.bf16.mxu0 0
    %201 = vmatmul.mubr.bf16.gmra.mrb[0].mxu0 %v110
    %v202 = vpop.f32.mrb[0].mxu0
    %v203 = vadd.f32 0.0, %v202
    %v204 = vpop.f32.mrb[0].mxu0
    %v205 = vpop.f32.mrb[0].mxu0
    %v206 = vadd.f32 0.0, %v205
    %v207 = vpop.f32.mrb[0].mxu0
    %208 = vdwg.mxu0
    %v209 = vld [vmem:[%s3] sm:$0xff]
    %v210 = vld [vmem:[%s3 + $0x8] sm:$0xff]
    %v211 = vld [vmem:[%s3 + $0x10] sm:$0xff]
    %v212 = vld [vmem:[%s3 + $0x18] sm:$0xff]
    %v213 = vld [vmem:[%s3 + $0x20] sm:$0xff]
    %v214 = vld [vmem:[%s3 + $0x28] sm:$0xff]
    %v215 = vld [vmem:[%s3 + $0x30] sm:$0xff]
    %v216 = vld [vmem:[%s3 + $0x38] sm:$0xff]
    %218 = vset.pattern.permute.xlu0 0
    %219 = vperm.xlu0 %218, %v209
    %v220 = vpop.permute.xlu0 %219
    %223 = vset.pattern.permute.xlu0 0
    %224 = vperm.xlu0 %223, %v210
    %v225 = vpop.permute.xlu0 %224
    %228 = vset.pattern.permute.xlu0 0
    %229 = vperm.xlu0 %228, %v211
    %v230 = vpop.permute.xlu0 %229
    %233 = vset.pattern.permute.xlu0 0
    %234 = vperm.xlu0 %233, %v212
    %v235 = vpop.permute.xlu0 %234
    %238 = vset.pattern.permute.xlu0 0
    %239 = vperm.xlu0 %238, %v213
    %v240 = vpop.permute.xlu0 %239
    %243 = vset.pattern.permute.xlu0 0
    %244 = vperm.xlu0 %243, %v214
    %v245 = vpop.permute.xlu0 %244
    %248 = vset.pattern.permute.xlu0 0
    %249 = vperm.xlu0 %248, %v215
    %v250 = vpop.permute.xlu0 %249
    %253 = vset.pattern.permute.xlu0 0
    %254 = vperm.xlu0 %253, %v216
    %v255 = vpop.permute.xlu0 %254
    %v257 = vadd.f32 %v147, %v220
    %v258 = vadd.f32 %v150, %v225
    %v259 = vadd.f32 %v155, %v230
    %v260 = vadd.f32 %v158, %v235
    %v261 = vadd.f32 %v163, %v240
    %v262 = vadd.f32 %v166, %v245
    %v263 = vadd.f32 %v171, %v250
    %v264 = vadd.f32 %v174, %v255
    %v265 = vsel %vm87, %v257, 0.0
    %v266 = vsel %vm87, %v258, 0.0
    %v267 = vadd.f32 %v265, %v266
    %v268 = vsel %vm87, %v259, 0.0
    %v269 = vadd.f32 %v267, %v268
    %v270 = vsel %vm87, %v260, 0.0
    %v271 = vadd.f32 %v269, %v270
    %v272 = vsel %vm87, %v261, 0.0
    %v273 = vadd.f32 %v271, %v272
    %v274 = vsel %vm87, %v262, 0.0
    %v275 = vadd.f32 %v273, %v274
    %v276 = vsel %vm87, %v263, 0.0
    %v277 = vadd.f32 %v275, %v276
    %v278 = vsel %vm87, %v264, 0.0
    %v279 = vadd.f32 %v277, %v278
    %v280 = vrot.slane %v279, 4
    %v281 = vadd.f32 %v279, %v280
    %v282 = vrot.slane %v281, 2
    %v283 = vadd.f32 %v281, %v282
    %v284 = vrot.slane %v283, 1
    %v285 = vadd.f32 %v283, %v284
    %v286 = vrcp.pop 64.0
    %v287 = vmul.f32 %v285, %v286
    %v288 = vsub.f32 %v257, %v287
    %v289 = vsub.f32 %v258, %v287
    %v290 = vsub.f32 %v259, %v287
    %v291 = vsub.f32 %v260, %v287
    %v292 = vsub.f32 %v261, %v287
    %v293 = vsub.f32 %v262, %v287
    %v294 = vsub.f32 %v263, %v287
    %v295 = vsub.f32 %v264, %v287
    %v296 = vmul.f32 %v288, %v288
    %v297 = vmul.f32 %v289, %v289
    %v298 = vmul.f32 %v290, %v290
    %v299 = vmul.f32 %v291, %v291
    %v300 = vmul.f32 %v292, %v292
    %v301 = vmul.f32 %v293, %v293
    %v302 = vmul.f32 %v294, %v294
    %v303 = vmul.f32 %v295, %v295
    %v304 = vsel %vm87, %v296, 0.0
    %v305 = vsel %vm87, %v297, 0.0
    %v306 = vadd.f32 %v304, %v305
    %v307 = vsel %vm87, %v298, 0.0
    %v308 = vadd.f32 %v306, %v307
    %v309 = vsel %vm87, %v299, 0.0
    %v310 = vadd.f32 %v308, %v309
    %v311 = vsel %vm87, %v300, 0.0
    %v312 = vadd.f32 %v310, %v311
    %v313 = vsel %vm87, %v301, 0.0
    %v314 = vadd.f32 %v312, %v313
    %v315 = vsel %vm87, %v302, 0.0
    %v316 = vadd.f32 %v314, %v315
    %v317 = vsel %vm87, %v303, 0.0
    %v318 = vadd.f32 %v316, %v317
    %v319 = vrot.slane %v318, 4
    %v320 = vadd.f32 %v318, %v319
    %v321 = vrot.slane %v320, 2
    %v322 = vadd.f32 %v320, %v321
    %v323 = vrot.slane %v322, 1
    %v324 = vadd.f32 %v322, %v323
    %v325 = vmul.f32 %v324, %v286
    %v326 = vadd.f32 %v325, 1e-05
    %v327 = vrsqrt.pop %v326
    %v328 = vmul.f32 %v288, %v327
    %v329 = vmul.f32 %v289, %v327
    %v330 = vmul.f32 %v290, %v327
    %v331 = vmul.f32 %v291, %v327
    %v332 = vmul.f32 %v292, %v327
    %v333 = vmul.f32 %v293, %v327
    %v334 = vmul.f32 %v294, %v327
    %v335 = vmul.f32 %v295, %v327
    %v336 = vld [vmem:[%s3 + $0x40] sm:$0xff]
    %v337 = vld [vmem:[%s3 + $0x48] sm:$0xff]
    %v338 = vld [vmem:[%s3 + $0x50] sm:$0xff]
    %v339 = vld [vmem:[%s3 + $0x58] sm:$0xff]
    %v340 = vld [vmem:[%s3 + $0x60] sm:$0xff]
    %v341 = vld [vmem:[%s3 + $0x68] sm:$0xff]
    %v342 = vld [vmem:[%s3 + $0x70] sm:$0xff]
    %v343 = vld [vmem:[%s3 + $0x78] sm:$0xff]
    %345 = vset.pattern.permute.xlu0 0
    %346 = vperm.xlu0 %345, %v336
    %v347 = vpop.permute.xlu0 %346
    %350 = vset.pattern.permute.xlu0 0
    %351 = vperm.xlu0 %350, %v337
    %v352 = vpop.permute.xlu0 %351
    %355 = vset.pattern.permute.xlu0 0
    %356 = vperm.xlu0 %355, %v338
    %v357 = vpop.permute.xlu0 %356
    %360 = vset.pattern.permute.xlu0 0
    %361 = vperm.xlu0 %360, %v339
    %v362 = vpop.permute.xlu0 %361
    %365 = vset.pattern.permute.xlu0 0
    %366 = vperm.xlu0 %365, %v340
    %v367 = vpop.permute.xlu0 %366
    %370 = vset.pattern.permute.xlu0 0
    %371 = vperm.xlu0 %370, %v341
    %v372 = vpop.permute.xlu0 %371
    %375 = vset.pattern.permute.xlu0 0
    %376 = vperm.xlu0 %375, %v342
    %v377 = vpop.permute.xlu0 %376
    %380 = vset.pattern.permute.xlu0 0
    %381 = vperm.xlu0 %380, %v343
    %v382 = vpop.permute.xlu0 %381
    %v384 = vadd.f32 %v179, %v347
    %v385 = vadd.f32 %v182, %v352
    %v386 = vadd.f32 %v187, %v357
    %v387 = vadd.f32 %v190, %v362
    %v388 = vadd.f32 %v195, %v367
    %v389 = vadd.f32 %v198, %v372
    %v390 = vadd.f32 %v203, %v377
    %v391 = vadd.f32 %v206, %v382
    %v392 = vsel %vm87, %v384, 0.0
    %v393 = vsel %vm87, %v385, 0.0
    %v394 = vadd.f32 %v392, %v393
    %v395 = vsel %vm87, %v386, 0.0
    %v396 = vadd.f32 %v394, %v395
    %v397 = vsel %vm87, %v387, 0.0
    %v398 = vadd.f32 %v396, %v397
    %v399 = vsel %vm87, %v388, 0.0
    %v400 = vadd.f32 %v398, %v399
    %v401 = vsel %vm87, %v389, 0.0
    %v402 = vadd.f32 %v400, %v401
    %v403 = vsel %vm87, %v390, 0.0
    %v404 = vadd.f32 %v402, %v403
    %v405 = vsel %vm87, %v391, 0.0
    %v406 = vadd.f32 %v404, %v405
    %v407 = vrot.slane %v406, 4
    %v408 = vadd.f32 %v406, %v407
    %v409 = vrot.slane %v408, 2
    %v410 = vadd.f32 %v408, %v409
    %v411 = vrot.slane %v410, 1
    %v412 = vadd.f32 %v410, %v411
    %v413 = vmul.f32 %v412, %v286
    %v414 = vsub.f32 %v384, %v413
    %v415 = vsub.f32 %v385, %v413
    %v416 = vsub.f32 %v386, %v413
    %v417 = vsub.f32 %v387, %v413
    %v418 = vsub.f32 %v388, %v413
    %v419 = vsub.f32 %v389, %v413
    %v420 = vsub.f32 %v390, %v413
    %v421 = vsub.f32 %v391, %v413
    %v422 = vmul.f32 %v414, %v414
    %v423 = vmul.f32 %v415, %v415
    %v424 = vmul.f32 %v416, %v416
    %v425 = vmul.f32 %v417, %v417
    %v426 = vmul.f32 %v418, %v418
    %v427 = vmul.f32 %v419, %v419
    %v428 = vmul.f32 %v420, %v420
    %v429 = vmul.f32 %v421, %v421
    %v430 = vsel %vm87, %v422, 0.0
    %v431 = vsel %vm87, %v423, 0.0
    %v432 = vadd.f32 %v430, %v431
    %v433 = vsel %vm87, %v424, 0.0
    %v434 = vadd.f32 %v432, %v433
    %v435 = vsel %vm87, %v425, 0.0
    %v436 = vadd.f32 %v434, %v435
    %v437 = vsel %vm87, %v426, 0.0
    %v438 = vadd.f32 %v436, %v437
    %v439 = vsel %vm87, %v427, 0.0
    %v440 = vadd.f32 %v438, %v439
    %v441 = vsel %vm87, %v428, 0.0
    %v442 = vadd.f32 %v440, %v441
    %v443 = vsel %vm87, %v429, 0.0
    %v444 = vadd.f32 %v442, %v443
    %v445 = vrot.slane %v444, 4
    %v446 = vadd.f32 %v444, %v445
    %v447 = vrot.slane %v446, 2
    %v448 = vadd.f32 %v446, %v447
    %v449 = vrot.slane %v448, 1
    %v450 = vadd.f32 %v448, %v449
    %v451 = vmul.f32 %v450, %v286
    %v452 = vadd.f32 %v451, 1e-05
    %v453 = vrsqrt.pop %v452
    %v454 = vmul.f32 %v414, %v453
    %v455 = vmul.f32 %v415, %v453
    %v456 = vmul.f32 %v416, %v453
    %v457 = vmul.f32 %v417, %v453
    %v458 = vmul.f32 %v418, %v453
    %v459 = vmul.f32 %v419, %v453
    %v460 = vmul.f32 %v420, %v453
    %v461 = vmul.f32 %v421, %v453
    %v462 = vmul.f32 %v328, %v454
    %v463 = vmul.f32 %v329, %v455
    %v464 = vmul.f32 %v330, %v456
    %v465 = vmul.f32 %v331, %v457
    %v466 = vmul.f32 %v332, %v458
    %v467 = vmul.f32 %v333, %v459
    %v468 = vmul.f32 %v334, %v460
    %v469 = vmul.f32 %v335, %v461
    %vm470 = vcmask 7168
    %471 = vst.msk [vmem:[#allocation2] sm:$0xff] %vm470, 0.0
    %472 = vst.msk [vmem:[#allocation2 + $0x8] sm:$0xff] %vm470, 0.0
    %473 = vst.msk [vmem:[#allocation2 + $0x10] sm:$0xff] %vm470, 0.0
    %474 = vst.msk [vmem:[#allocation2 + $0x18] sm:$0xff] %vm470, 0.0
    %475 = vst.msk [vmem:[#allocation2 + $0x20] sm:$0xff] %vm470, 0.0
    %476 = vst.msk [vmem:[#allocation2 + $0x28] sm:$0xff] %vm470, 0.0
    %477 = vst.msk [vmem:[#allocation2 + $0x30] sm:$0xff] %vm470, 0.0
    %478 = vst.msk [vmem:[#allocation2 + $0x38] sm:$0xff] %vm470, 0.0
    %vm479 = vcmask 540168
    %480 = vst.msk [vmem:[#allocation2] sm:$0xff] %vm479, 0.0
    %481 = vst.msk [vmem:[#allocation2 + $0x8] sm:$0xff] %vm479, 0.0
    %482 = vst.msk [vmem:[#allocation2 + $0x10] sm:$0xff] %vm479, 0.0
    %483 = vst.msk [vmem:[#allocation2 + $0x18] sm:$0xff] %vm479, 0.0
    %484 = vst.msk [vmem:[#allocation2 + $0x20] sm:$0xff] %vm479, 0.0
    %485 = vst.msk [vmem:[#allocation2 + $0x28] sm:$0xff] %vm479, 0.0
    %486 = vst.msk [vmem:[#allocation2 + $0x30] sm:$0xff] %vm479, 0.0
    %487 = vst.msk [vmem:[#allocation2 + $0x38] sm:$0xff] %vm479, 0.0
    %496 = vrot.lane.b32.xlu0 %v462, 1
    %v497 = vpop.permute.xlu0 %496
    %498 = vrot.lane.b32.xlu0 %v463, 1
    %v499 = vpop.permute.xlu0 %498
    %500 = vrot.lane.b32.xlu0 %v464, 1
    %v501 = vpop.permute.xlu0 %500
    %502 = vrot.lane.b32.xlu0 %v465, 1
    %v503 = vpop.permute.xlu0 %502
    %504 = vrot.lane.b32.xlu0 %v466, 1
    %v505 = vpop.permute.xlu0 %504
    %506 = vrot.lane.b32.xlu0 %v467, 1
    %v507 = vpop.permute.xlu0 %506
    %508 = vrot.lane.b32.xlu0 %v468, 1
    %v509 = vpop.permute.xlu0 %508
    %510 = vrot.lane.b32.xlu0 %v469, 1
    %v511 = vpop.permute.xlu0 %510
    %vm520 = vcmask 531464
    %521 = vst.msk [vmem:[#allocation2] sm:$0xff] %vm520, %v497
    %522 = vst.msk [vmem:[#allocation2 + $0x8] sm:$0xff] %vm520, %v499
    %523 = vst.msk [vmem:[#allocation2 + $0x10] sm:$0xff] %vm520, %v501
    %524 = vst.msk [vmem:[#allocation2 + $0x18] sm:$0xff] %vm520, %v503
    %525 = vst.msk [vmem:[#allocation2 + $0x20] sm:$0xff] %vm520, %v505
    %526 = vst.msk [vmem:[#allocation2 + $0x28] sm:$0xff] %vm520, %v507
    %527 = vst.msk [vmem:[#allocation2 + $0x30] sm:$0xff] %vm520, %v509
    %528 = vst.msk [vmem:[#allocation2 + $0x38] sm:$0xff] %vm520, %v511
    %v529 = vld [vmem:[#allocation2] sm:$0xff]
    %v530 = vld [vmem:[#allocation2 + $0x8] sm:$0xff]
    %v531 = vld [vmem:[#allocation2 + $0x10] sm:$0xff]
    %v532 = vld [vmem:[#allocation2 + $0x18] sm:$0xff]
    %v533 = vld [vmem:[#allocation2 + $0x20] sm:$0xff]
    %v534 = vld [vmem:[#allocation2 + $0x28] sm:$0xff]
    %v535 = vld [vmem:[#allocation2 + $0x30] sm:$0xff]
    %v536 = vld [vmem:[#allocation2 + $0x38] sm:$0xff]
    %v537 = vpack.c.bf16 %v530, %v529
    %v538 = vpack.c.bf16 %v532, %v531
    %v539 = vpack.c.bf16 %v534, %v533
    %v540 = vpack.c.bf16 %v536, %v535
    %v541 = vpack.c.bf16 %v463, %v462
    %v542 = vpack.c.bf16 %v465, %v464
    %v543 = vpack.c.bf16 %v467, %v466
    %v544 = vpack.c.bf16 %v469, %v468
    %v545 = vld [vmem:[%s2 + $0x40] sm:$0xf]
    %v546 = vld [vmem:[%s2 + $0x44] sm:$0xf]
    %v547 = vld [vmem:[%s2 + $0x48] sm:$0xf]
    %v548 = vld [vmem:[%s2 + $0x4c] sm:$0xf]
    %v549 = vld [vmem:[%s2 + $0x50] sm:$0xf]
    %v550 = vld [vmem:[%s2 + $0x54] sm:$0xf]
    %v551 = vld [vmem:[%s2 + $0x58] sm:$0xf]
    %v552 = vld [vmem:[%s2 + $0x5c] sm:$0xf]
    %v553 = vld [vmem:[%s2 + $0x60] sm:$0xf]
    %v554 = vld [vmem:[%s2 + $0x64] sm:$0xf]
    %v555 = vld [vmem:[%s2 + $0x68] sm:$0xf]
    %v556 = vld [vmem:[%s2 + $0x6c] sm:$0xf]
    %v557 = vld [vmem:[%s2 + $0x70] sm:$0xf]
    %v558 = vld [vmem:[%s2 + $0x74] sm:$0xf]
    %v559 = vld [vmem:[%s2 + $0x78] sm:$0xf]
    %v560 = vld [vmem:[%s2 + $0x7c] sm:$0xf]
    %v569 = vunpack.c.l.b16 %v553
    %v570 = vunpack.c.l.b16 %v554
    %v571 = vunpack.c.l.b16 %v555
    %v572 = vunpack.c.l.b16 %v556
    %v573 = vunpack.c.l.b16 %v557
    %v574 = vunpack.c.l.b16 %v558
    %v575 = vunpack.c.l.b16 %v559
    %v576 = vunpack.c.l.b16 %v560
    %v577 = vpack.c.b16 %v570, %v569
    %v578 = vpack.c.b16 %v572, %v571
    %v579 = vpack.c.b16 %v574, %v573
    %v580 = vpack.c.b16 %v576, %v575
    %v582 = vsel %vm87, %v577, 0
    %v585 = vsel %vm87, %v578, 0
    %v588 = vsel %vm87, %v579, 0
    %v591 = vsel %vm87, %v580, 0
    %593 = vmatprep.subr.bf16.mxu0 0
    %594 = vmatpush1.bf16.msra.mxu0 %v541
    %595 = vmatprep.subr.bf16.mxu0 0
    %596 = vmatpush1.bf16.msra.mxu0 %v542
    %597 = vmatprep.subr.bf16.mxu0 0
    %598 = vmatpush1.bf16.msra.mxu0 %v543
    %599 = vmatprep.subr.bf16.mxu0 0
    %600 = vmatpush1.bf16.msra.mxu0 %v544
    %601 = vmatprep.subr.bf16.mxu0 0
    %602 = vmatpush1.bf16.msra.mxu0 0
    %603 = vmatprep.subr.bf16.mxu0 0
    %604 = vmatpush1.bf16.msra.mxu0 0
    %605 = vmatprep.subr.bf16.mxu0 0
    %606 = vmatpush1.bf16.msra.mxu0 0
    %607 = vmatprep.subr.bf16.mxu0 0
    %608 = vmatpush1.bf16.msra.mxu0 0
    %609 = vmatprep.subr.bf16.mxu0 0
    %610 = vmatpush1.bf16.msra.mxu0 0
    %611 = vmatprep.subr.bf16.mxu0 0
    %612 = vmatpush1.bf16.msra.mxu0 0
    %613 = vmatprep.subr.bf16.mxu0 0
    %614 = vmatpush1.bf16.msra.mxu0 0
    %615 = vmatprep.subr.bf16.mxu0 0
    %616 = vmatpush1.bf16.msra.mxu0 0
    %617 = vmatprep.subr.bf16.mxu0 0
    %618 = vmatpush1.bf16.msra.mxu0 0
    %619 = vmatprep.subr.bf16.mxu0 0
    %620 = vmatpush1.bf16.msra.mxu0 0
    %621 = vmatprep.subr.bf16.mxu0 0
    %622 = vmatpush1.bf16.msra.mxu0 0
    %623 = vmatprep.subr.bf16.mxu0 0
    %624 = vmatpush1.bf16.msra.mxu0 0
    %625 = vmatprep.mubr.bf16.mxu0 0
    %626 = vmatmul.mubr.bf16.gmra.mrb[0].mxu0 %v582
    %v627 = vpop.f32.mrb[0].mxu0
    %v628 = vadd.f32 0.0, %v627
    %v629 = vpop.f32.mrb[0].mxu0
    %v630 = vpop.f32.mrb[0].mxu0
    %v631 = vadd.f32 0.0, %v630
    %v632 = vpop.f32.mrb[0].mxu0
    %633 = vmatprep.mubr.bf16.mxu0 0
    %634 = vmatmul.mubr.bf16.gmra.mrb[0].mxu0 %v585
    %v635 = vpop.f32.mrb[0].mxu0
    %v636 = vadd.f32 0.0, %v635
    %v637 = vpop.f32.mrb[0].mxu0
    %v638 = vpop.f32.mrb[0].mxu0
    %v639 = vadd.f32 0.0, %v638
    %v640 = vpop.f32.mrb[0].mxu0
    %641 = vmatprep.mubr.bf16.mxu0 0
    %642 = vmatmul.mubr.bf16.gmra.mrb[0].mxu0 %v588
    %v643 = vpop.f32.mrb[0].mxu0
    %v644 = vadd.f32 0.0, %v643
    %v645 = vpop.f32.mrb[0].mxu0
    %v646 = vpop.f32.mrb[0].mxu0
    %v647 = vadd.f32 0.0, %v646
    %v648 = vpop.f32.mrb[0].mxu0
    %649 = vmatprep.mubr.bf16.mxu0 0
    %650 = vmatmul.mubr.bf16.gmra.mrb[0].mxu0 %v591
    %v651 = vpop.f32.mrb[0].mxu0
    %v652 = vadd.f32 0.0, %v651
    %v653 = vpop.f32.mrb[0].mxu0
    %v654 = vpop.f32.mrb[0].mxu0
    %v655 = vadd.f32 0.0, %v654
    %v656 = vpop.f32.mrb[0].mxu0
    %657 = vdwg.mxu0
    %v666 = vunpack.c.l.b16 %v545
    %v667 = vunpack.c.l.b16 %v546
    %v668 = vunpack.c.l.b16 %v547
    %v669 = vunpack.c.l.b16 %v548
    %v670 = vunpack.c.l.b16 %v549
    %v671 = vunpack.c.l.b16 %v550
    %v672 = vunpack.c.l.b16 %v551
    %v673 = vunpack.c.l.b16 %v552
    %v674 = vpack.c.b16 %v667, %v666
    %v675 = vpack.c.b16 %v669, %v668
    %v676 = vpack.c.b16 %v671, %v670
    %v677 = vpack.c.b16 %v673, %v672
    %v679 = vsel %vm87, %v674, 0
    %v682 = vsel %vm87, %v675, 0
    %v685 = vsel %vm87, %v676, 0
    %v688 = vsel %vm87, %v677, 0
    %690 = vmatprep.subr.bf16.mxu0 0
    %691 = vmatpush1.bf16.msra.mxu0 %v537
    %692 = vmatprep.subr.bf16.mxu0 0
    %693 = vmatpush1.bf16.msra.mxu0 %v538
    %694 = vmatprep.subr.bf16.mxu0 0
    %695 = vmatpush1.bf16.msra.mxu0 %v539
    %696 = vmatprep.subr.bf16.mxu0 0
    %697 = vmatpush1.bf16.msra.mxu0 %v540
    %698 = vmatprep.subr.bf16.mxu0 0
    %699 = vmatpush1.bf16.msra.mxu0 0
    %700 = vmatprep.subr.bf16.mxu0 0
    %701 = vmatpush1.bf16.msra.mxu0 0
    %702 = vmatprep.subr.bf16.mxu0 0
    %703 = vmatpush1.bf16.msra.mxu0 0
    %704 = vmatprep.subr.bf16.mxu0 0
    %705 = vmatpush1.bf16.msra.mxu0 0
    %706 = vmatprep.subr.bf16.mxu0 0
    %707 = vmatpush1.bf16.msra.mxu0 0
    %708 = vmatprep.subr.bf16.mxu0 0
    %709 = vmatpush1.bf16.msra.mxu0 0
    %710 = vmatprep.subr.bf16.mxu0 0
    %711 = vmatpush1.bf16.msra.mxu0 0
    %712 = vmatprep.subr.bf16.mxu0 0
    %713 = vmatpush1.bf16.msra.mxu0 0
    %714 = vmatprep.subr.bf16.mxu0 0
    %715 = vmatpush1.bf16.msra.mxu0 0
    %716 = vmatprep.subr.bf16.mxu0 0
    %717 = vmatpush1.bf16.msra.mxu0 0
    %718 = vmatprep.subr.bf16.mxu0 0
    %719 = vmatpush1.bf16.msra.mxu0 0
    %720 = vmatprep.subr.bf16.mxu0 0
    %721 = vmatpush1.bf16.msra.mxu0 0
    %722 = vmatprep.mubr.bf16.mxu0 0
    %723 = vmatmul.mubr.bf16.gmra.mrb[0].mxu0 %v679
    %v724 = vpop.f32.mrb[0].mxu0
    %v725 = vadd.f32 %v628, %v724
    %v726 = vpop.f32.mrb[0].mxu0
    %v727 = vpop.f32.mrb[0].mxu0
    %v728 = vadd.f32 %v631, %v727
    %v729 = vpop.f32.mrb[0].mxu0
    %730 = vmatprep.mubr.bf16.mxu0 0
    %731 = vmatmul.mubr.bf16.gmra.mrb[0].mxu0 %v682
    %v732 = vpop.f32.mrb[0].mxu0
    %v733 = vadd.f32 %v636, %v732
    %v734 = vpop.f32.mrb[0].mxu0
    %v735 = vpop.f32.mrb[0].mxu0
    %v736 = vadd.f32 %v639, %v735
    %v737 = vpop.f32.mrb[0].mxu0
    %738 = vmatprep.mubr.bf16.mxu0 0
    %739 = vmatmul.mubr.bf16.gmra.mrb[0].mxu0 %v685
    %v740 = vpop.f32.mrb[0].mxu0
    %v741 = vadd.f32 %v644, %v740
    %v742 = vpop.f32.mrb[0].mxu0
    %v743 = vpop.f32.mrb[0].mxu0
    %v744 = vadd.f32 %v647, %v743
    %v745 = vpop.f32.mrb[0].mxu0
    %746 = vmatprep.mubr.bf16.mxu0 0
    %747 = vmatmul.mubr.bf16.gmra.mrb[0].mxu0 %v688
    %v748 = vpop.f32.mrb[0].mxu0
    %v749 = vadd.f32 %v652, %v748
    %v750 = vpop.f32.mrb[0].mxu0
    %v751 = vpop.f32.mrb[0].mxu0
    %v752 = vadd.f32 %v655, %v751
    %v753 = vpop.f32.mrb[0].mxu0
    %754 = vdwg.mxu0
    %v755 = vld [vmem:[%s2 + $0x80] sm:$0xf]
    %v756 = vld [vmem:[%s2 + $0x84] sm:$0xf]
    %v757 = vld [vmem:[%s2 + $0x88] sm:$0xf]
    %v758 = vld [vmem:[%s2 + $0x8c] sm:$0xf]
    %v759 = vld [vmem:[%s2 + $0x90] sm:$0xf]
    %v760 = vld [vmem:[%s2 + $0x94] sm:$0xf]
    %v761 = vld [vmem:[%s2 + $0x98] sm:$0xf]
    %v762 = vld [vmem:[%s2 + $0x9c] sm:$0xf]
    %v771 = vunpack.c.l.b16 %v755
    %v772 = vunpack.c.l.b16 %v756
    %v773 = vunpack.c.l.b16 %v757
    %v774 = vunpack.c.l.b16 %v758
    %v775 = vunpack.c.l.b16 %v759
    %v776 = vunpack.c.l.b16 %v760
    %v777 = vunpack.c.l.b16 %v761
    %v778 = vunpack.c.l.b16 %v762
    %v779 = vpack.c.b16 %v772, %v771
    %v780 = vpack.c.b16 %v774, %v773
    %v781 = vpack.c.b16 %v776, %v775
    %v782 = vpack.c.b16 %v778, %v777
    %787 = vrot.lane.b32.xlu0 %v537, 126
    %v788 = vpop.permute.xlu0 %787
    %789 = vrot.lane.b32.xlu0 %v538, 126
    %v790 = vpop.permute.xlu0 %789
    %791 = vrot.lane.b32.xlu0 %v539, 126
    %v792 = vpop.permute.xlu0 %791
    %793 = vrot.lane.b32.xlu0 %v540, 126
    %v794 = vpop.permute.xlu0 %793
    %v800 = vsel %vm87, %v779, 0
    %v803 = vsel %vm87, %v780, 0
    %v806 = vsel %vm87, %v781, 0
    %v809 = vsel %vm87, %v782, 0
    %811 = vmatprep.subr.bf16.mxu0 0
    %812 = vmatpush1.bf16.msra.mxu0 %v788
    %813 = vmatprep.subr.bf16.mxu0 0
    %814 = vmatpush1.bf16.msra.mxu0 %v790
    %815 = vmatprep.subr.bf16.mxu0 0
    %816 = vmatpush1.bf16.msra.mxu0 %v792
    %817 = vmatprep.subr.bf16.mxu0 0
    %818 = vmatpush1.bf16.msra.mxu0 %v794
    %819 = vmatprep.subr.bf16.mxu0 0
    %820 = vmatpush1.bf16.msra.mxu0 0
    %821 = vmatprep.subr.bf16.mxu0 0
    %822 = vmatpush1.bf16.msra.mxu0 0
    %823 = vmatprep.subr.bf16.mxu0 0
    %824 = vmatpush1.bf16.msra.mxu0 0
    %825 = vmatprep.subr.bf16.mxu0 0
    %826 = vmatpush1.bf16.msra.mxu0 0
    %827 = vmatprep.subr.bf16.mxu0 0
    %828 = vmatpush1.bf16.msra.mxu0 0
    %829 = vmatprep.subr.bf16.mxu0 0
    %830 = vmatpush1.bf16.msra.mxu0 0
    %831 = vmatprep.subr.bf16.mxu0 0
    %832 = vmatpush1.bf16.msra.mxu0 0
    %833 = vmatprep.subr.bf16.mxu0 0
    %834 = vmatpush1.bf16.msra.mxu0 0
    %835 = vmatprep.subr.bf16.mxu0 0
    %836 = vmatpush1.bf16.msra.mxu0 0
    %837 = vmatprep.subr.bf16.mxu0 0
    %838 = vmatpush1.bf16.msra.mxu0 0
    %839 = vmatprep.subr.bf16.mxu0 0
    %840 = vmatpush1.bf16.msra.mxu0 0
    %841 = vmatprep.subr.bf16.mxu0 0
    %842 = vmatpush1.bf16.msra.mxu0 0
    %843 = vmatprep.mubr.bf16.mxu0 0
    %844 = vmatmul.mubr.bf16.gmra.mrb[0].mxu0 %v800
    %v845 = vpop.f32.mrb[0].mxu0
    %v846 = vadd.f32 0.0, %v845
    %v847 = vpop.f32.mrb[0].mxu0
    %v848 = vpop.f32.mrb[0].mxu0
    %v849 = vadd.f32 0.0, %v848
    %v850 = vpop.f32.mrb[0].mxu0
    %851 = vmatprep.mubr.bf16.mxu0 0
    %852 = vmatmul.mubr.bf16.gmra.mrb[0].mxu0 %v803
    %v853 = vpop.f32.mrb[0].mxu0
    %v854 = vadd.f32 0.0, %v853
    %v855 = vpop.f32.mrb[0].mxu0
    %v856 = vpop.f32.mrb[0].mxu0
    %v857 = vadd.f32 0.0, %v856
    %v858 = vpop.f32.mrb[0].mxu0
    %859 = vmatprep.mubr.bf16.mxu0 0
    %860 = vmatmul.mubr.bf16.gmra.mrb[0].mxu0 %v806
    %v861 = vpop.f32.mrb[0].mxu0
    %v862 = vadd.f32 0.0, %v861
    %v863 = vpop.f32.mrb[0].mxu0
    %v864 = vpop.f32.mrb[0].mxu0
    %v865 = vadd.f32 0.0, %v864
    %v866 = vpop.f32.mrb[0].mxu0
    %867 = vmatprep.mubr.bf16.mxu0 0
    %868 = vmatmul.mubr.bf16.gmra.mrb[0].mxu0 %v809
    %v869 = vpop.f32.mrb[0].mxu0
    %v870 = vadd.f32 0.0, %v869
    %v871 = vpop.f32.mrb[0].mxu0
    %v872 = vpop.f32.mrb[0].mxu0
    %v873 = vadd.f32 0.0, %v872
    %v874 = vpop.f32.mrb[0].mxu0
    %875 = vdwg.mxu0
    %v876 = vadd.f32 %v725, %v846
    %v877 = vadd.f32 %v728, %v849
    %v878 = vadd.f32 %v733, %v854
    %v879 = vadd.f32 %v736, %v857
    %v880 = vadd.f32 %v741, %v862
    %v881 = vadd.f32 %v744, %v865
    %v882 = vadd.f32 %v749, %v870
    %v883 = vadd.f32 %v752, %v873
    %v884 = vld [vmem:[%s3 + $0x80] sm:$0xff]
    %v885 = vld [vmem:[%s3 + $0x88] sm:$0xff]
    %v886 = vld [vmem:[%s3 + $0x90] sm:$0xff]
    %v887 = vld [vmem:[%s3 + $0x98] sm:$0xff]
    %v888 = vld [vmem:[%s3 + $0xa0] sm:$0xff]
    %v889 = vld [vmem:[%s3 + $0xa8] sm:$0xff]
    %v890 = vld [vmem:[%s3 + $0xb0] sm:$0xff]
    %v891 = vld [vmem:[%s3 + $0xb8] sm:$0xff]
    %893 = vset.pattern.permute.xlu0 0
    %894 = vperm.xlu0 %893, %v884
    %v895 = vpop.permute.xlu0 %894
    %898 = vset.pattern.permute.xlu0 0
    %899 = vperm.xlu0 %898, %v885
    %v900 = vpop.permute.xlu0 %899
    %903 = vset.pattern.permute.xlu0 0
    %904 = vperm.xlu0 %903, %v886
    %v905 = vpop.permute.xlu0 %904
    %908 = vset.pattern.permute.xlu0 0
    %909 = vperm.xlu0 %908, %v887
    %v910 = vpop.permute.xlu0 %909
    %913 = vset.pattern.permute.xlu0 0
    %914 = vperm.xlu0 %913, %v888
    %v915 = vpop.permute.xlu0 %914
    %918 = vset.pattern.permute.xlu0 0
    %919 = vperm.xlu0 %918, %v889
    %v920 = vpop.permute.xlu0 %919
    %923 = vset.pattern.permute.xlu0 0
    %924 = vperm.xlu0 %923, %v890
    %v925 = vpop.permute.xlu0 %924
    %928 = vset.pattern.permute.xlu0 0
    %929 = vperm.xlu0 %928, %v891
    %v930 = vpop.permute.xlu0 %929
    %v932 = vadd.f32 %v876, %v895
    %v933 = vadd.f32 %v877, %v900
    %v934 = vadd.f32 %v878, %v905
    %v935 = vadd.f32 %v879, %v910
    %v936 = vadd.f32 %v880, %v915
    %v937 = vadd.f32 %v881, %v920
    %v938 = vadd.f32 %v882, %v925
    %v939 = vadd.f32 %v883, %v930
    %v940 = vsel %vm87, %v932, 0.0
    %v941 = vsel %vm87, %v933, 0.0
    %v942 = vadd.f32 %v940, %v941
    %v943 = vsel %vm87, %v934, 0.0
    %v944 = vadd.f32 %v942, %v943
    %v945 = vsel %vm87, %v935, 0.0
    %v946 = vadd.f32 %v944, %v945
    %v947 = vsel %vm87, %v936, 0.0
    %v948 = vadd.f32 %v946, %v947
    %v949 = vsel %vm87, %v937, 0.0
    %v950 = vadd.f32 %v948, %v949
    %v951 = vsel %vm87, %v938, 0.0
    %v952 = vadd.f32 %v950, %v951
    %v953 = vsel %vm87, %v939, 0.0
    %v954 = vadd.f32 %v952, %v953
    %v955 = vrot.slane %v954, 4
    %v956 = vadd.f32 %v954, %v955
    %v957 = vrot.slane %v956, 2
    %v958 = vadd.f32 %v956, %v957
    %v959 = vrot.slane %v958, 1
    %v960 = vadd.f32 %v958, %v959
    %v961 = vmul.f32 %v960, %v286
    %v962 = vsub.f32 %v932, %v961
    %v963 = vsub.f32 %v933, %v961
    %v964 = vsub.f32 %v934, %v961
    %v965 = vsub.f32 %v935, %v961
    %v966 = vsub.f32 %v936, %v961
    %v967 = vsub.f32 %v937, %v961
    %v968 = vsub.f32 %v938, %v961
    %v969 = vsub.f32 %v939, %v961
    %v970 = vmul.f32 %v962, %v962
    %v971 = vmul.f32 %v963, %v963
    %v972 = vmul.f32 %v964, %v964
    %v973 = vmul.f32 %v965, %v965
    %v974 = vmul.f32 %v966, %v966
    %v975 = vmul.f32 %v967, %v967
    %v976 = vmul.f32 %v968, %v968
    %v977 = vmul.f32 %v969, %v969
    %v978 = vsel %vm87, %v970, 0.0
    %v979 = vsel %vm87, %v971, 0.0
    %v980 = vadd.f32 %v978, %v979
    %v981 = vsel %vm87, %v972, 0.0
    %v982 = vadd.f32 %v980, %v981
    %v983 = vsel %vm87, %v973, 0.0
    %v984 = vadd.f32 %v982, %v983
    %v985 = vsel %vm87, %v974, 0.0
    %v986 = vadd.f32 %v984, %v985
    %v987 = vsel %vm87, %v975, 0.0
    %v988 = vadd.f32 %v986, %v987
    %v989 = vsel %vm87, %v976, 0.0
    %v990 = vadd.f32 %v988, %v989
    %v991 = vsel %vm87, %v977, 0.0
    %v992 = vadd.f32 %v990, %v991
    %v993 = vrot.slane %v992, 4
    %v994 = vadd.f32 %v992, %v993
    %v995 = vrot.slane %v994, 2
    %v996 = vadd.f32 %v994, %v995
    %v997 = vrot.slane %v996, 1
    %v998 = vadd.f32 %v996, %v997
    %v999 = vmul.f32 %v998, %v286
    %v1000 = vadd.f32 %v999, 1e-05
    %v1001 = vrsqrt.pop %v1000
    %v1002 = vmul.f32 %v962, %v1001
    %v1003 = vmul.f32 %v963, %v1001
    %v1004 = vmul.f32 %v964, %v1001
    %v1005 = vmul.f32 %v965, %v1001
    %v1006 = vmul.f32 %v966, %v1001
    %v1007 = vmul.f32 %v967, %v1001
    %v1008 = vmul.f32 %v968, %v1001
    %v1009 = vmul.f32 %v969, %v1001
    %v1010 = vmax.f32 %v1002, 0.0
    %v1011 = vmax.f32 %v1003, 0.0
    %v1012 = vmax.f32 %v1004, 0.0
    %v1013 = vmax.f32 %v1005, 0.0
    %v1014 = vmax.f32 %v1006, 0.0
    %v1015 = vmax.f32 %v1007, 0.0
    %v1016 = vmax.f32 %v1008, 0.0
    %v1017 = vmax.f32 %v1009, 0.0
    %vm1018 = vcmask 1048064
    %1019 = vst.msk [vmem:[#allocation3 + $0x8] sm:$0xff] %vm1018, 0.0
    %1020 = vst.msk [vmem:[#allocation3 + $0x18] sm:$0xff] %vm1018, 0.0
    %1021 = vst.msk [vmem:[#allocation3 + $0x28] sm:$0xff] %vm1018, 0.0
    %1022 = vst.msk [vmem:[#allocation3 + $0x38] sm:$0xff] %vm1018, 0.0
    %v1023 = vsel %vm87, %v19, -inf
    %1024 = vmax.xlane.f32.xlu0 %v1023
    %v1025 = vpop.xlane.xlu0 %1024
    %v1026 = vsel %vm87, %v20, -inf
    %1027 = vmax.xlane.f32.xlu0 %v1026
    %v1028 = vpop.xlane.xlu0 %1027
    %v1029 = vsel %vm87, %v21, -inf
    %1030 = vmax.xlane.f32.xlu0 %v1029
    %v1031 = vpop.xlane.xlu0 %1030
    %v1032 = vsel %vm87, %v22, -inf
    %1033 = vmax.xlane.f32.xlu0 %v1032
    %v1034 = vpop.xlane.xlu0 %1033
    %v1035 = vxor.u32 %v1025, 2147483648
    %v1036 = vxor.u32 %v1028, 2147483648
    %v1037 = vxor.u32 %v1031, 2147483648
    %v1038 = vxor.u32 %v1034, 2147483648
    %v1039 = vmul.f32 %v1035, 1.442695
    %v1040 = vpow.pop %v1039
    %v1041 = vmul.f32 %v1036, 1.442695
    %v1042 = vpow.pop %v1041
    %v1043 = vmul.f32 %v1037, 1.442695
    %v1044 = vpow.pop %v1043
    %v1045 = vmul.f32 %v1038, 1.442695
    %v1046 = vpow.pop %v1045
    %v1047 = vadd.f32 %v1040, 1.0
    %v1048 = vadd.f32 %v1042, 1.0
    %v1049 = vadd.f32 %v1044, 1.0
    %v1050 = vadd.f32 %v1046, 1.0
    %v1051 = vrcp.pop %v1047
    %v1052 = vmul.f32 1.0, %v1051
    %v1053 = vrcp.pop %v1048
    %v1054 = vmul.f32 1.0, %v1053
    %v1055 = vrcp.pop %v1049
    %v1056 = vmul.f32 1.0, %v1055
    %v1057 = vrcp.pop %v1050
    %v1058 = vmul.f32 1.0, %v1057
    %1059 = vst.msk [vmem:[#allocation3] sm:$0xff] %vm470, %v1052
    %1060 = vst.msk [vmem:[#allocation3 + $0x10] sm:$0xff] %vm470, %v1054
    %1061 = vst.msk [vmem:[#allocation3 + $0x20] sm:$0xff] %vm470, %v1056
    %1062 = vst.msk [vmem:[#allocation3 + $0x30] sm:$0xff] %vm470, %v1058
    %v1063 = vsel %vm87, %v19, 0.0
    %1064 = vadd.xlane.f32.xlu0 %v1063
    %v1065 = vpop.xlane.xlu0 %1064
    %v1066 = vsel %vm87, %v20, 0.0
    %1067 = vadd.xlane.f32.xlu0 %v1066
    %v1068 = vpop.xlane.xlu0 %1067
    %v1069 = vsel %vm87, %v21, 0.0
    %1070 = vadd.xlane.f32.xlu0 %v1069
    %v1071 = vpop.xlane.xlu0 %1070
    %v1072 = vsel %vm87, %v22, 0.0
    %1073 = vadd.xlane.f32.xlu0 %v1072
    %v1074 = vpop.xlane.xlu0 %1073
    %v1075 = vmul.f32 %v1065, %v286
    %v1076 = vmul.f32 %v1068, %v286
    %v1077 = vmul.f32 %v1071, %v286
    %v1078 = vmul.f32 %v1074, %v286
    %v1079 = vxor.u32 %v1075, 2147483648
    %v1080 = vxor.u32 %v1076, 2147483648
    %v1081 = vxor.u32 %v1077, 2147483648
    %v1082 = vxor.u32 %v1078, 2147483648
    %v1083 = vmul.f32 %v1079, 1.442695
    %v1084 = vpow.pop %v1083
    %v1085 = vmul.f32 %v1080, 1.442695
    %v1086 = vpow.pop %v1085
    %v1087 = vmul.f32 %v1081, 1.442695
    %v1088 = vpow.pop %v1087
    %v1089 = vmul.f32 %v1082, 1.442695
    %v1090 = vpow.pop %v1089
    %v1091 = vadd.f32 %v1084, 1.0
    %v1092 = vadd.f32 %v1086, 1.0
    %v1093 = vadd.f32 %v1088, 1.0
    %v1094 = vadd.f32 %v1090, 1.0
    %v1095 = vrcp.pop %v1091
    %v1096 = vmul.f32 1.0, %v1095
    %v1097 = vrcp.pop %v1092
    %v1098 = vmul.f32 1.0, %v1097
    %v1099 = vrcp.pop %v1093
    %v1100 = vmul.f32 1.0, %v1099
    %v1101 = vrcp.pop %v1094
    %v1102 = vmul.f32 1.0, %v1101
    %vm1103 = vcmask 15368
    %1104 = vst.msk [vmem:[#allocation3] sm:$0xff] %vm1103, %v1096
    %1105 = vst.msk [vmem:[#allocation3 + $0x10] sm:$0xff] %vm1103, %v1098
    %1106 = vst.msk [vmem:[#allocation3 + $0x20] sm:$0xff] %vm1103, %v1100
    %1107 = vst.msk [vmem:[#allocation3 + $0x30] sm:$0xff] %vm1103, %v1102
    %v1108 = vld [vmem:[%s2 + $0xa0] sm:$0xf]
    %v1109 = vld [vmem:[%s3 + $0xc0] sm:$0xff]
    %1111 = vset.pattern.permute.xlu0 0
    %1112 = vperm.xlu0 %1111, %v1109
    %v1113 = vpop.permute.xlu0 %1112
    %vm1115 = vcmask 261120
    %v1117 = vsel %vm1115, %v1108, 0
    %1119 = vmatprep.subr.bf16.mxu0 0
    %1120 = vmatpush1.bf16.msra.mxu0 %v29
    %1121 = vmatprep.subr.bf16.mxu0 0
    %1122 = vmatpush1.bf16.msra.mxu0 %v30
    %1123 = vmatprep.subr.bf16.mxu0 0
    %1124 = vmatpush1.bf16.msra.mxu0 0
    %1125 = vmatprep.subr.bf16.mxu0 0
    %1126 = vmatpush1.bf16.msra.mxu0 0
    %1127 = vmatprep.subr.bf16.mxu0 0
    %1128 = vmatpush1.bf16.msra.mxu0 0
    %1129 = vmatprep.subr.bf16.mxu0 0
    %1130 = vmatpush1.bf16.msra.mxu0 0
    %1131 = vmatprep.subr.bf16.mxu0 0
    %1132 = vmatpush1.bf16.msra.mxu0 0
    %1133 = vmatprep.subr.bf16.mxu0 0
    %1134 = vmatpush1.bf16.msra.mxu0 0
    %1135 = vmatprep.subr.bf16.mxu0 0
    %1136 = vmatpush1.bf16.msra.mxu0 0
    %1137 = vmatprep.subr.bf16.mxu0 0
    %1138 = vmatpush1.bf16.msra.mxu0 0
    %1139 = vmatprep.subr.bf16.mxu0 0
    %1140 = vmatpush1.bf16.msra.mxu0 0
    %1141 = vmatprep.subr.bf16.mxu0 0
    %1142 = vmatpush1.bf16.msra.mxu0 0
    %1143 = vmatprep.subr.bf16.mxu0 0
    %1144 = vmatpush1.bf16.msra.mxu0 0
    %1145 = vmatprep.subr.bf16.mxu0 0
    %1146 = vmatpush1.bf16.msra.mxu0 0
    %1147 = vmatprep.subr.bf16.mxu0 0
    %1148 = vmatpush1.bf16.msra.mxu0 0
    %1149 = vmatprep.subr.bf16.mxu0 0
    %1150 = vmatpush1.bf16.msra.mxu0 0
    %1151 = vmatprep.mubr.bf16.mxu0 0
    %1152 = vmatmul.mubr.bf16.gmra.mrb[0].mxu0 %v1117
    %v1153 = vpop.f32.mrb[0].mxu0
    %v1154 = vadd.f32 %v1113, %v1153
    %v1155 = vpop.f32.mrb[0].mxu0
    %v1156 = vpop.f32.mrb[0].mxu0
    %v1157 = vpop.f32.mrb[0].mxu0
    %1158 = vdwg.mxu0
    %v1159 = vmax.f32 %v1154, 0.0
    %v1160 = vld [vmem:[%s2 + $0xa8] sm:$0xf]
    %v1161 = vld [vmem:[%s2 + $0xac] sm:$0xf]
    %v1162 = vld [vmem:[%s2 + $0xb0] sm:$0xf]
    %v1163 = vld [vmem:[%s2 + $0xb4] sm:$0xf]
    %v1164 = vpack.c.bf16 %v1159, %v1159
    %v1165 = vld [vmem:[%s3 + $0xc8] sm:$0xff]
    %v1166 = vld [vmem:[%s3 + $0xd0] sm:$0xff]
    %v1167 = vld [vmem:[%s3 + $0xd8] sm:$0xff]
    %v1168 = vld [vmem:[%s3 + $0xe0] sm:$0xff]
    %1170 = vset.pattern.permute.xlu0 0
    %1171 = vperm.xlu0 %1170, %v1165
    %v1172 = vpop.permute.xlu0 %1171
    %1175 = vset.pattern.permute.xlu0 0
    %1176 = vperm.xlu0 %1175, %v1166
    %v1177 = vpop.permute.xlu0 %1176
    %1180 = vset.pattern.permute.xlu0 0
    %1181 = vperm.xlu0 %1180, %v1167
    %v1182 = vpop.permute.xlu0 %1181
    %1185 = vset.pattern.permute.xlu0 0
    %1186 = vperm.xlu0 %1185, %v1168
    %v1187 = vpop.permute.xlu0 %1186
    %v1193 = vunpack.c.l.b16 %v1160
    %v1194 = vunpack.c.l.b16 %v1161
    %v1195 = vunpack.c.l.b16 %v1162
    %v1196 = vunpack.c.l.b16 %v1163
    %v1197 = vpack.c.b16 %v1194, %v1193
    %v1198 = vpack.c.b16 %v1196, %v1195
    %vm1199 = vcmask 64512
    %v1201 = vsel %vm1199, %v1197, 0
    %v1204 = vsel %vm1199, %v1198, 0
    %vm1206 = vcmask 1043456
    %v1208 = vsel %vm1206, %v1164, 0
    %1210 = vmatprep.subr.bf16.mxu0 0
    %1211 = vmatpush1.bf16.msra.mxu0 %v1208
    %1212 = vmatprep.subr.bf16.mxu0 0
    %1213 = vmatpush1.bf16.msra.mxu0 0
    %1214 = vmatprep.subr.bf16.mxu0 0
    %1215 = vmatpush1.bf16.msra.mxu0 0
    %1216 = vmatprep.subr.bf16.mxu0 0
    %1217 = vmatpush1.bf16.msra.mxu0 0
    %1218 = vmatprep.subr.bf16.mxu0 0
    %1219 = vmatpush1.bf16.msra.mxu0 0
    %1220 = vmatprep.subr.bf16.mxu0 0
    %1221 = vmatpush1.bf16.msra.mxu0 0
    %1222 = vmatprep.subr.bf16.mxu0 0
    %1223 = vmatpush1.bf16.msra.mxu0 0
    %1224 = vmatprep.subr.bf16.mxu0 0
    %1225 = vmatpush1.bf16.msra.mxu0 0
    %1226 = vmatprep.subr.bf16.mxu0 0
    %1227 = vmatpush1.bf16.msra.mxu0 0
    %1228 = vmatprep.subr.bf16.mxu0 0
    %1229 = vmatpush1.bf16.msra.mxu0 0
    %1230 = vmatprep.subr.bf16.mxu0 0
    %1231 = vmatpush1.bf16.msra.mxu0 0
    %1232 = vmatprep.subr.bf16.mxu0 0
    %1233 = vmatpush1.bf16.msra.mxu0 0
    %1234 = vmatprep.subr.bf16.mxu0 0
    %1235 = vmatpush1.bf16.msra.mxu0 0
    %1236 = vmatprep.subr.bf16.mxu0 0
    %1237 = vmatpush1.bf16.msra.mxu0 0
    %1238 = vmatprep.subr.bf16.mxu0 0
    %1239 = vmatpush1.bf16.msra.mxu0 0
    %1240 = vmatprep.subr.bf16.mxu0 0
    %1241 = vmatpush1.bf16.msra.mxu0 0
    %1242 = vmatprep.mubr.bf16.mxu0 0
    %1243 = vmatmul.mubr.bf16.gmra.mrb[0].mxu0 %v1201
    %v1244 = vpop.f32.mrb[0].mxu0
    %v1245 = vadd.f32 %v1172, %v1244
    %v1246 = vpop.f32.mrb[0].mxu0
    %v1247 = vpop.f32.mrb[0].mxu0
    %v1248 = vadd.f32 %v1177, %v1247
    %v1249 = vpop.f32.mrb[0].mxu0
    %1250 = vmatprep.mubr.bf16.mxu0 0
    %1251 = vmatmul.mubr.bf16.gmra.mrb[0].mxu0 %v1204
    %v1252 = vpop.f32.mrb[0].mxu0
    %v1253 = vadd.f32 %v1182, %v1252
    %v1254 = vpop.f32.mrb[0].mxu0
    %v1255 = vpop.f32.mrb[0].mxu0
    %v1256 = vadd.f32 %v1187, %v1255
    %v1257 = vpop.f32.mrb[0].mxu0
    %1258 = vdwg.mxu0
    %v1259 = vxor.u32 %v1245, 2147483648
    %v1260 = vxor.u32 %v1248, 2147483648
    %v1261 = vxor.u32 %v1253, 2147483648
    %v1262 = vxor.u32 %v1256, 2147483648
    %v1263 = vmul.f32 %v1259, 1.442695
    %v1264 = vpow.pop %v1263
    %v1265 = vmul.f32 %v1260, 1.442695
    %v1266 = vpow.pop %v1265
    %v1267 = vmul.f32 %v1261, 1.442695
    %v1268 = vpow.pop %v1267
    %v1269 = vmul.f32 %v1262, 1.442695
    %v1270 = vpow.pop %v1269
    %v1271 = vadd.f32 %v1264, 1.0
    %v1272 = vadd.f32 %v1266, 1.0
    %v1273 = vadd.f32 %v1268, 1.0
    %v1274 = vadd.f32 %v1270, 1.0
    %v1275 = vrcp.pop %v1271
    %v1276 = vmul.f32 1.0, %v1275
    %v1277 = vrcp.pop %v1272
    %v1278 = vmul.f32 1.0, %v1277
    %v1279 = vrcp.pop %v1273
    %v1280 = vmul.f32 1.0, %v1279
    %v1281 = vrcp.pop %v1274
    %v1282 = vmul.f32 1.0, %v1281
    %1287 = vrot.lane.b32.xlu0 %v1276, 2
    %v1288 = vpop.permute.xlu0 %1287
    %1289 = vrot.lane.b32.xlu0 %v1278, 2
    %v1290 = vpop.permute.xlu0 %1289
    %1291 = vrot.lane.b32.xlu0 %v1280, 2
    %v1292 = vpop.permute.xlu0 %1291
    %1293 = vrot.lane.b32.xlu0 %v1282, 2
    %v1294 = vpop.permute.xlu0 %1293
    %vm1299 = vcmask 539664
    %1300 = vst.msk [vmem:[#allocation3] sm:$0xff] %vm1299, %v1288
    %1301 = vst.msk [vmem:[#allocation3 + $0x10] sm:$0xff] %vm1299, %v1290
    %1302 = vst.msk [vmem:[#allocation3 + $0x20] sm:$0xff] %vm1299, %v1292
    %1303 = vst.msk [vmem:[#allocation3 + $0x30] sm:$0xff] %vm1299, %v1294
    %1308 = vrot.lane.b32.xlu0 %v1010, 66
    %v1309 = vpop.permute.xlu0 %1308
    %1310 = vrot.lane.b32.xlu0 %v1011, 66
    %v1311 = vpop.permute.xlu0 %1310
    %1312 = vrot.lane.b32.xlu0 %v1012, 66
    %v1313 = vpop.permute.xlu0 %1312
    %1314 = vrot.lane.b32.xlu0 %v1013, 66
    %v1315 = vpop.permute.xlu0 %1314
    %vm1320 = vcmask 1048080
    %1321 = vst.msk [vmem:[#allocation3] sm:$0xff] %vm1320, %v1309
    %vm1322 = vcmask 15360
    %1323 = vst.msk [vmem:[#allocation3 + $0x8] sm:$0xff] %vm1322, %v1309
    %1324 = vst.msk [vmem:[#allocation3 + $0x10] sm:$0xff] %vm1320, %v1311
    %1325 = vst.msk [vmem:[#allocation3 + $0x18] sm:$0xff] %vm1322, %v1311
    %1326 = vst.msk [vmem:[#allocation3 + $0x20] sm:$0xff] %vm1320, %v1313
    %1327 = vst.msk [vmem:[#allocation3 + $0x28] sm:$0xff] %vm1322, %v1313
    %1328 = vst.msk [vmem:[#allocation3 + $0x30] sm:$0xff] %vm1320, %v1315
    %1329 = vst.msk [vmem:[#allocation3 + $0x38] sm:$0xff] %vm1322, %v1315
    %1334 = vrot.lane.b32.xlu0 %v1014, 2
    %v1335 = vpop.permute.xlu0 %1334
    %1336 = vrot.lane.b32.xlu0 %v1015, 2
    %v1337 = vpop.permute.xlu0 %1336
    %1338 = vrot.lane.b32.xlu0 %v1016, 2
    %v1339 = vpop.permute.xlu0 %1338
    %1340 = vrot.lane.b32.xlu0 %v1017, 2
    %v1341 = vpop.permute.xlu0 %1340
    %1346 = vst.msk [vmem:[#allocation3 + $0x8] sm:$0xff] %vm1299, %v1335
    %1347 = vst.msk [vmem:[#allocation3 + $0x18] sm:$0xff] %vm1299, %v1337
    %1348 = vst.msk [vmem:[#allocation3 + $0x28] sm:$0xff] %vm1299, %v1339
    %1349 = vst.msk [vmem:[#allocation3 + $0x38] sm:$0xff] %vm1299, %v1341
    %v1350 = vld [vmem:[#allocation3] sm:$0xff]
    %v1351 = vld [vmem:[#allocation3 + $0x8] sm:$0xff]
    %v1352 = vld [vmem:[#allocation3 + $0x10] sm:$0xff]
    %v1353 = vld [vmem:[#allocation3 + $0x18] sm:$0xff]
    %v1354 = vld [vmem:[#allocation3 + $0x20] sm:$0xff]
    %v1355 = vld [vmem:[#allocation3 + $0x28] sm:$0xff]
    %v1356 = vld [vmem:[#allocation3 + $0x30] sm:$0xff]
    %v1357 = vld [vmem:[#allocation3 + $0x38] sm:$0xff]
    %v1358 = vpack.c.bf16 %v1352, %v1350
    %v1359 = vpack.c.bf16 %v1353, %v1351
    %v1360 = vpack.c.bf16 %v1356, %v1354
    %v1361 = vpack.c.bf16 %v1357, %v1355
    %v1362 = vadd.f32 %v1350, %v1352
    %v1363 = vadd.f32 %v1362, %v1354
    %v1364 = vadd.f32 %v1363, %v1356
    %v1365 = vrot.slane %v1364, 4
    %v1366 = vadd.f32 %v1364, %v1365
    %v1367 = vrot.slane %v1366, 2
    %v1368 = vadd.f32 %v1366, %v1367
    %v1369 = vrot.slane %v1368, 1
    %v1370 = vadd.f32 %v1368, %v1369
    %v1371 = vadd.f32 %v1351, %v1353
    %v1372 = vadd.f32 %v1371, %v1355
    %v1373 = vadd.f32 %v1372, %v1357
    %v1374 = vrot.slane %v1373, 4
    %v1375 = vadd.f32 %v1373, %v1374
    %v1376 = vrot.slane %v1375, 2
    %v1377 = vadd.f32 %v1375, %v1376
    %v1378 = vrot.slane %v1377, 1
    %v1379 = vadd.f32 %v1377, %v1378
    %v1380 = vrcp.pop 32.0
    %v1381 = vmul.f32 %v1370, %v1380
    %v1382 = vmul.f32 %v1379, %v1380
    %v1383 = vsub.f32 %v1350, %v1381
    %v1384 = vsub.f32 %v1351, %v1382
    %v1385 = vsub.f32 %v1352, %v1381
    %v1386 = vsub.f32 %v1353, %v1382
    %v1387 = vsub.f32 %v1354, %v1381
    %v1388 = vsub.f32 %v1355, %v1382
    %v1389 = vsub.f32 %v1356, %v1381
    %v1390 = vsub.f32 %v1357, %v1382
    %v1391 = vmul.f32 %v1383, %v1383
    %v1392 = vmul.f32 %v1384, %v1384
    %v1393 = vmul.f32 %v1385, %v1385
    %v1394 = vmul.f32 %v1386, %v1386
    %v1395 = vmul.f32 %v1387, %v1387
    %v1396 = vmul.f32 %v1388, %v1388
    %v1397 = vmul.f32 %v1389, %v1389
    %v1398 = vmul.f32 %v1390, %v1390
    %v1399 = vadd.f32 %v1391, %v1393
    %v1400 = vadd.f32 %v1399, %v1395
    %v1401 = vadd.f32 %v1400, %v1397
    %v1402 = vrot.slane %v1401, 4
    %v1403 = vadd.f32 %v1401, %v1402
    %v1404 = vrot.slane %v1403, 2
    %v1405 = vadd.f32 %v1403, %v1404
    %v1406 = vrot.slane %v1405, 1
    %v1407 = vadd.f32 %v1405, %v1406
    %v1408 = vadd.f32 %v1392, %v1394
    %v1409 = vadd.f32 %v1408, %v1396
    %v1410 = vadd.f32 %v1409, %v1398
    %v1411 = vrot.slane %v1410, 4
    %v1412 = vadd.f32 %v1410, %v1411
    %v1413 = vrot.slane %v1412, 2
    %v1414 = vadd.f32 %v1412, %v1413
    %v1415 = vrot.slane %v1414, 1
    %v1416 = vadd.f32 %v1414, %v1415
    %v1417 = vmul.f32 %v1407, %v1380
    %v1418 = vmul.f32 %v1416, %v1380
    %v1419 = vadd.f32 %v1417, 1e-05
    %v1420 = vadd.f32 %v1418, 1e-05
    %v1421 = vrsqrt.pop %v1419
    %v1422 = vrsqrt.pop %v1420
    %v1423 = vmul.f32 %v1383, %v1421
    %v1424 = vmul.f32 %v1384, %v1422
    %v1425 = vmul.f32 %v1385, %v1421
    %v1426 = vmul.f32 %v1386, %v1422
    %v1427 = vmul.f32 %v1387, %v1421
    %v1428 = vmul.f32 %v1388, %v1422
    %v1429 = vmul.f32 %v1389, %v1421
    %v1430 = vmul.f32 %v1390, %v1422
    %v1431 = vmax.f32 %v1423, 0.0
    %v1432 = vmax.f32 %v1424, 0.0
    %v1433 = vmax.f32 %v1425, 0.0
    %v1434 = vmax.f32 %v1426, 0.0
    %v1435 = vmax.f32 %v1427, 0.0
    %v1436 = vmax.f32 %v1428, 0.0
    %v1437 = vmax.f32 %v1429, 0.0
    %v1438 = vmax.f32 %v1430, 0.0
    %v1439 = vld [vmem:[%s2 + $0xd8] sm:$0xf]
    %v1440 = vld [vmem:[%s2 + $0xdc] sm:$0xf]
    %v1441 = vld [vmem:[%s2 + $0xe0] sm:$0xf]
    %v1442 = vld [vmem:[%s2 + $0xe4] sm:$0xf]
    %v1443 = vpack.c.bf16 %v1433, %v1431
    %v1444 = vpack.c.bf16 %v1434, %v1432
    %v1445 = vpack.c.bf16 %v1437, %v1435
    %v1446 = vpack.c.bf16 %v1438, %v1436
    %v1447 = vld [vmem:[%s3 + $0x128] sm:$0xff]
    %v1448 = vld [vmem:[%s3 + $0x130] sm:$0xff]
    %v1449 = vld [vmem:[%s3 + $0x138] sm:$0xff]
    %v1450 = vld [vmem:[%s3 + $0x140] sm:$0xff]
    %1452 = vset.pattern.permute.xlu0 0
    %1453 = vperm.xlu0 %1452, %v1447
    %v1454 = vpop.permute.xlu0 %1453
    %1457 = vset.pattern.permute.xlu0 0
    %1458 = vperm.xlu0 %1457, %v1448
    %v1459 = vpop.permute.xlu0 %1458
    %1462 = vset.pattern.permute.xlu0 0
    %1463 = vperm.xlu0 %1462, %v1449
    %v1464 = vpop.permute.xlu0 %1463
    %1467 = vset.pattern.permute.xlu0 0
    %1468 = vperm.xlu0 %1467, %v1450
    %v1469 = vpop.permute.xlu0 %1468
    %v1475 = vunpack.c.l.b16 %v1439
    %v1476 = vunpack.c.l.b16 %v1440
    %v1477 = vunpack.c.l.b16 %v1441
    %v1478 = vunpack.c.l.b16 %v1442
    %v1479 = vpack.c.b16 %v1476, %v1475
    %v1480 = vpack.c.b16 %v1478, %v1477
    %v1482 = vsel %vm1115, %v1479, 0
    %v1485 = vsel %vm1115, %v1480, 0
    %1487 = vmatprep.subr.bf16.mxu0 %v1444
    %1488 = vmatpush1.bf16.msra.mxu0 %v1443
    %1489 = vmatprep.subr.bf16.mxu0 %v1446
    %1490 = vmatpush1.bf16.msra.mxu0 %v1445
    %1491 = vmatprep.subr.bf16.mxu0 0
    %1492 = vmatpush1.bf16.msra.mxu0 0
    %1493 = vmatprep.subr.bf16.mxu0 0
    %1494 = vmatpush1.bf16.msra.mxu0 0
    %1495 = vmatprep.subr.bf16.mxu0 0
    %1496 = vmatpush1.bf16.msra.mxu0 0
    %1497 = vmatprep.subr.bf16.mxu0 0
    %1498 = vmatpush1.bf16.msra.mxu0 0
    %1499 = vmatprep.subr.bf16.mxu0 0
    %1500 = vmatpush1.bf16.msra.mxu0 0
    %1501 = vmatprep.subr.bf16.mxu0 0
    %1502 = vmatpush1.bf16.msra.mxu0 0
    %1503 = vmatprep.subr.bf16.mxu0 0
    %1504 = vmatpush1.bf16.msra.mxu0 0
    %1505 = vmatprep.subr.bf16.mxu0 0
    %1506 = vmatpush1.bf16.msra.mxu0 0
    %1507 = vmatprep.subr.bf16.mxu0 0
    %1508 = vmatpush1.bf16.msra.mxu0 0
    %1509 = vmatprep.subr.bf16.mxu0 0
    %1510 = vmatpush1.bf16.msra.mxu0 0
    %1511 = vmatprep.subr.bf16.mxu0 0
    %1512 = vmatpush1.bf16.msra.mxu0 0
    %1513 = vmatprep.subr.bf16.mxu0 0
    %1514 = vmatpush1.bf16.msra.mxu0 0
    %1515 = vmatprep.subr.bf16.mxu0 0
    %1516 = vmatpush1.bf16.msra.mxu0 0
    %1517 = vmatprep.subr.bf16.mxu0 0
    %1518 = vmatpush1.bf16.msra.mxu0 0
    %1519 = vmatprep.mubr.bf16.mxu0 0
    %1520 = vmatmul.mubr.bf16.gmra.mrb[0].mxu0 %v1482
    %v1521 = vpop.f32.mrb[0].mxu0
    %v1522 = vadd.f32 %v1454, %v1521
    %v1523 = vpop.f32.mrb[0].mxu0
    %v1524 = vadd.f32 %v1454, %v1523
    %v1525 = vpop.f32.mrb[0].mxu0
    %v1526 = vadd.f32 %v1459, %v1525
    %v1527 = vpop.f32.mrb[0].mxu0
    %v1528 = vadd.f32 %v1459, %v1527
    %1529 = vmatprep.mubr.bf16.mxu0 0
    %1530 = vmatmul.mubr.bf16.gmra.mrb[0].mxu0 %v1485
    %v1531 = vpop.f32.mrb[0].mxu0
    %v1532 = vadd.f32 %v1464, %v1531
    %v1533 = vpop.f32.mrb[0].mxu0
    %v1534 = vadd.f32 %v1464, %v1533
    %v1535 = vpop.f32.mrb[0].mxu0
    %v1536 = vadd.f32 %v1469, %v1535
    %v1537 = vpop.f32.mrb[0].mxu0
    %v1538 = vadd.f32 %v1469, %v1537
    %1539 = vdwg.mxu0
    %v1540 = vadd.f32 %v1522, %v1526
    %v1541 = vadd.f32 %v1540, %v1532
    %v1542 = vadd.f32 %v1541, %v1536
    %v1543 = vrot.slane %v1542, 4
    %v1544 = vadd.f32 %v1542, %v1543
    %v1545 = vrot.slane %v1544, 2
    %v1546 = vadd.f32 %v1544, %v1545
    %v1547 = vrot.slane %v1546, 1
    %v1548 = vadd.f32 %v1546, %v1547
    %v1549 = vadd.f32 %v1524, %v1528
    %v1550 = vadd.f32 %v1549, %v1534
    %v1551 = vadd.f32 %v1550, %v1538
    %v1552 = vrot.slane %v1551, 4
    %v1553 = vadd.f32 %v1551, %v1552
    %v1554 = vrot.slane %v1553, 2
    %v1555 = vadd.f32 %v1553, %v1554
    %v1556 = vrot.slane %v1555, 1
    %v1557 = vadd.f32 %v1555, %v1556
    %v1558 = vmul.f32 %v1548, %v1380
    %v1559 = vmul.f32 %v1557, %v1380
    %v1560 = vsub.f32 %v1522, %v1558
    %v1561 = vsub.f32 %v1524, %v1559
    %v1562 = vsub.f32 %v1526, %v1558
    %v1563 = vsub.f32 %v1528, %v1559
    %v1564 = vsub.f32 %v1532, %v1558
    %v1565 = vsub.f32 %v1534, %v1559
    %v1566 = vsub.f32 %v1536, %v1558
    %v1567 = vsub.f32 %v1538, %v1559
    %v1568 = vmul.f32 %v1560, %v1560
    %v1569 = vmul.f32 %v1561, %v1561
    %v1570 = vmul.f32 %v1562, %v1562
    %v1571 = vmul.f32 %v1563, %v1563
    %v1572 = vmul.f32 %v1564, %v1564
    %v1573 = vmul.f32 %v1565, %v1565
    %v1574 = vmul.f32 %v1566, %v1566
    %v1575 = vmul.f32 %v1567, %v1567
    %v1576 = vadd.f32 %v1568, %v1570
    %v1577 = vadd.f32 %v1576, %v1572
    %v1578 = vadd.f32 %v1577, %v1574
    %v1579 = vrot.slane %v1578, 4
    %v1580 = vadd.f32 %v1578, %v1579
    %v1581 = vrot.slane %v1580, 2
    %v1582 = vadd.f32 %v1580, %v1581
    %v1583 = vrot.slane %v1582, 1
    %v1584 = vadd.f32 %v1582, %v1583
    %v1585 = vadd.f32 %v1569, %v1571
    %v1586 = vadd.f32 %v1585, %v1573
    %v1587 = vadd.f32 %v1586, %v1575
    %v1588 = vrot.slane %v1587, 4
    %v1589 = vadd.f32 %v1587, %v1588
    %v1590 = vrot.slane %v1589, 2
    %v1591 = vadd.f32 %v1589, %v1590
    %v1592 = vrot.slane %v1591, 1
    %v1593 = vadd.f32 %v1591, %v1592
    %v1594 = vmul.f32 %v1584, %v1380
    %v1595 = vmul.f32 %v1593, %v1380
    %v1596 = vadd.f32 %v1594, 1e-05
    %v1597 = vadd.f32 %v1595, 1e-05
    %v1598 = vrsqrt.pop %v1596
    %v1599 = vrsqrt.pop %v1597
    %v1600 = vmul.f32 %v1560, %v1598
    %v1601 = vmul.f32 %v1561, %v1599
    %v1602 = vmul.f32 %v1562, %v1598
    %v1603 = vmul.f32 %v1563, %v1599
    %v1604 = vmul.f32 %v1564, %v1598
    %v1605 = vmul.f32 %v1565, %v1599
    %v1606 = vmul.f32 %v1566, %v1598
    %v1607 = vmul.f32 %v1567, %v1599
    %v1608 = vmax.f32 %v1600, 0.0
    %v1609 = vmax.f32 %v1601, 0.0
    %v1610 = vmax.f32 %v1602, 0.0
    %v1611 = vmax.f32 %v1603, 0.0
    %v1612 = vmax.f32 %v1604, 0.0
    %v1613 = vmax.f32 %v1605, 0.0
    %v1614 = vmax.f32 %v1606, 0.0
    %v1615 = vmax.f32 %v1607, 0.0
    %v1616 = vlaneseq
    %v1617 = vand.u32 %v1616, 127
    %v1618 = vadd.s32 %v1617, 128
    %vm1619 = vcmp.lt.s32.totalorder %v1617, 194
    %vm1620 = vcmp.lt.s32.totalorder %v1618, 194
    %v1621 = vsel %vm1619, %v1608, 0.0
    %v1622 = vsel %vm1620, %v1609, 0.0
    %v1623 = vsel %vm1619, %v1610, 0.0
    %v1624 = vsel %vm1620, %v1611, 0.0
    %v1625 = vsel %vm1619, %v1612, 0.0
    %v1626 = vsel %vm1620, %v1613, 0.0
    %v1627 = vsel %vm1619, %v1614, 0.0
    %v1628 = vsel %vm1620, %v1615, 0.0
    %1629 = vrot.lane.b32.xlu0 %v1621, 1
    %v1630 = vpop.permute.xlu0 %1629
    %1631 = vrot.lane.b32.xlu0 %v1623, 1
    %v1632 = vpop.permute.xlu0 %1631
    %1633 = vrot.lane.b32.xlu0 %v1625, 1
    %v1634 = vpop.permute.xlu0 %1633
    %1635 = vrot.lane.b32.xlu0 %v1627, 1
    %v1636 = vpop.permute.xlu0 %1635
    %1637 = vrot.lane.b32.xlu0 %v1622, 1
    %v1638 = vpop.permute.xlu0 %1637
    %1639 = vrot.lane.b32.xlu0 %v1624, 1
    %v1640 = vpop.permute.xlu0 %1639
    %1641 = vrot.lane.b32.xlu0 %v1626, 1
    %v1642 = vpop.permute.xlu0 %1641
    %1643 = vrot.lane.b32.xlu0 %v1628, 1
    %v1644 = vpop.permute.xlu0 %1643
    %vm1645 = vcmp.lt.s32.totalorder %v1617, 1
    %v1646 = vsel %vm1645, %v1630, %v1638
    %v1647 = vsel %vm1645, %v1632, %v1640
    %v1648 = vsel %vm1645, %v1634, %v1642
    %v1649 = vsel %vm1645, %v1636, %v1644
    %v1650 = vsel %vm1645, %v1638, %v1630
    %v1651 = vsel %vm1645, %v1640, %v1632
    %v1652 = vsel %vm1645, %v1642, %v1634
    %v1653 = vsel %vm1645, %v1644, %v1636
    %v1654 = vpack.c.bf16 %v1651, %v1650
    %v1655 = vpack.c.bf16 %v1647, %v1646
    %v1656 = vpack.c.bf16 %v1653, %v1652
    %v1657 = vpack.c.bf16 %v1649, %v1648
    %1658 = vrot.lane.b32.xlu0 %v1621, 127
    %v1659 = vpop.permute.xlu0 %1658
    %1660 = vrot.lane.b32.xlu0 %v1623, 127
    %v1661 = vpop.permute.xlu0 %1660
    %1662 = vrot.lane.b32.xlu0 %v1625, 127
    %v1663 = vpop.permute.xlu0 %1662
    %1664 = vrot.lane.b32.xlu0 %v1627, 127
    %v1665 = vpop.permute.xlu0 %1664
    %1666 = vrot.lane.b32.xlu0 %v1622, 127
    %v1667 = vpop.permute.xlu0 %1666
    %1668 = vrot.lane.b32.xlu0 %v1624, 127
    %v1669 = vpop.permute.xlu0 %1668
    %1670 = vrot.lane.b32.xlu0 %v1626, 127
    %v1671 = vpop.permute.xlu0 %1670
    %1672 = vrot.lane.b32.xlu0 %v1628, 127
    %v1673 = vpop.permute.xlu0 %1672
    %vm1674 = vcmp.lt.s32.totalorder %v1617, 127
    %v1675 = vsel %vm1674, %v1659, %v1667
    %v1676 = vsel %vm1674, %v1661, %v1669
    %v1677 = vsel %vm1674, %v1663, %v1671
    %v1678 = vsel %vm1674, %v1665, %v1673
    %v1679 = vsel %vm1674, %v1667, %v1659
    %v1680 = vsel %vm1674, %v1669, %v1661
    %v1681 = vsel %vm1674, %v1671, %v1663
    %v1682 = vsel %vm1674, %v1673, %v1665
    %v1683 = vpack.c.bf16 %v1676, %v1675
    %v1684 = vpack.c.bf16 %v1680, %v1679
    %v1685 = vpack.c.bf16 %v1678, %v1677
    %v1686 = vpack.c.bf16 %v1682, %v1681
    %v1687 = vpack.c.bf16 %v1623, %v1621
    %v1688 = vpack.c.bf16 %v1624, %v1622
    %v1689 = vpack.c.bf16 %v1627, %v1625
    %v1690 = vpack.c.bf16 %v1628, %v1626
    %v1691 = vld [vmem:[%s2 + $0xe8] sm:$0xf]
    %v1692 = vld [vmem:[%s2 + $0xec] sm:$0xf]
    %v1693 = vld [vmem:[%s2 + $0xf0] sm:$0xf]
    %v1694 = vld [vmem:[%s2 + $0xf4] sm:$0xf]
    %v1695 = vld [vmem:[%s2 + $0xf8] sm:$0xf]
    %v1696 = vld [vmem:[%s2 + $0xfc] sm:$0xf]
    %v1697 = vld [vmem:[%s2 + $0x100] sm:$0xf]
    %v1698 = vld [vmem:[%s2 + $0x104] sm:$0xf]
    %v1703 = vunpack.c.l.b16 %v1695
    %v1704 = vunpack.c.l.b16 %v1696
    %v1705 = vunpack.c.l.b16 %v1697
    %v1706 = vunpack.c.l.b16 %v1698
    %v1707 = vpack.c.b16 %v1704, %v1703
    %v1708 = vpack.c.b16 %v1706, %v1705
    %v1710 = vsel %vm1115, %v1707, 0
    %v1713 = vsel %vm1115, %v1708, 0
    %1715 = vmatprep.subr.bf16.mxu0 %v1688
    %1716 = vmatpush1.bf16.msra.mxu0 %v1687
    %1717 = vmatprep.subr.bf16.mxu0 %v1690
    %1718 = vmatpush1.bf16.msra.mxu0 %v1689
    %1719 = vmatprep.subr.bf16.mxu0 0
    %1720 = vmatpush1.bf16.msra.mxu0 0
    %1721 = vmatprep.subr.bf16.mxu0 0
    %1722 = vmatpush1.bf16.msra.mxu0 0
    %1723 = vmatprep.subr.bf16.mxu0 0
    %1724 = vmatpush1.bf16.msra.mxu0 0
    %1725 = vmatprep.subr.bf16.mxu0 0
    %1726 = vmatpush1.bf16.msra.mxu0 0
    %1727 = vmatprep.subr.bf16.mxu0 0
    %1728 = vmatpush1.bf16.msra.mxu0 0
    %1729 = vmatprep.subr.bf16.mxu0 0
    %1730 = vmatpush1.bf16.msra.mxu0 0
    %1731 = vmatprep.subr.bf16.mxu0 0
    %1732 = vmatpush1.bf16.msra.mxu0 0
    %1733 = vmatprep.subr.bf16.mxu0 0
    %1734 = vmatpush1.bf16.msra.mxu0 0
    %1735 = vmatprep.subr.bf16.mxu0 0
    %1736 = vmatpush1.bf16.msra.mxu0 0
    %1737 = vmatprep.subr.bf16.mxu0 0
    %1738 = vmatpush1.bf16.msra.mxu0 0
    %1739 = vmatprep.subr.bf16.mxu0 0
    %1740 = vmatpush1.bf16.msra.mxu0 0
    %1741 = vmatprep.subr.bf16.mxu0 0
    %1742 = vmatpush1.bf16.msra.mxu0 0
    %1743 = vmatprep.subr.bf16.mxu0 0
    %1744 = vmatpush1.bf16.msra.mxu0 0
    %1745 = vmatprep.subr.bf16.mxu0 0
    %1746 = vmatpush1.bf16.msra.mxu0 0
    %1747 = vmatprep.mubr.bf16.mxu0 0
    %1748 = vmatmul.mubr.bf16.gmra.mrb[0].mxu0 %v1710
    %v1749 = vpop.f32.mrb[0].mxu0
    %v1750 = vadd.f32 0.0, %v1749
    %v1751 = vpop.f32.mrb[0].mxu0
    %v1752 = vadd.f32 0.0, %v1751
    %v1753 = vpop.f32.mrb[0].mxu0
    %v1754 = vadd.f32 0.0, %v1753
    %v1755 = vpop.f32.mrb[0].mxu0
    %v1756 = vadd.f32 0.0, %v1755
    %1757 = vmatprep.mubr.bf16.mxu0 0
    %1758 = vmatmul.mubr.bf16.gmra.mrb[0].mxu0 %v1713
    %v1759 = vpop.f32.mrb[0].mxu0
    %v1760 = vadd.f32 0.0, %v1759
    %v1761 = vpop.f32.mrb[0].mxu0
    %v1762 = vadd.f32 0.0, %v1761
    %v1763 = vpop.f32.mrb[0].mxu0
    %v1764 = vadd.f32 0.0, %v1763
    %v1765 = vpop.f32.mrb[0].mxu0
    %v1766 = vadd.f32 0.0, %v1765
    %1767 = vdwg.mxu0
    %v1772 = vunpack.c.l.b16 %v1691
    %v1773 = vunpack.c.l.b16 %v1692
    %v1774 = vunpack.c.l.b16 %v1693
    %v1775 = vunpack.c.l.b16 %v1694
    %v1776 = vpack.c.b16 %v1773, %v1772
    %v1777 = vpack.c.b16 %v1775, %v1774
    %v1779 = vsel %vm1115, %v1776, 0
    %v1782 = vsel %vm1115, %v1777, 0
    %1784 = vmatprep.subr.bf16.mxu0 %v1655
    %1785 = vmatpush1.bf16.msra.mxu0 %v1654
    %1786 = vmatprep.subr.bf16.mxu0 %v1657
    %1787 = vmatpush1.bf16.msra.mxu0 %v1656
    %1788 = vmatprep.subr.bf16.mxu0 0
    %1789 = vmatpush1.bf16.msra.mxu0 0
    %1790 = vmatprep.subr.bf16.mxu0 0
    %1791 = vmatpush1.bf16.msra.mxu0 0
    %1792 = vmatprep.subr.bf16.mxu0 0
    %1793 = vmatpush1.bf16.msra.mxu0 0
    %1794 = vmatprep.subr.bf16.mxu0 0
    %1795 = vmatpush1.bf16.msra.mxu0 0
    %1796 = vmatprep.subr.bf16.mxu0 0
    %1797 = vmatpush1.bf16.msra.mxu0 0
    %1798 = vmatprep.subr.bf16.mxu0 0
    %1799 = vmatpush1.bf16.msra.mxu0 0
    %1800 = vmatprep.subr.bf16.mxu0 0
    %1801 = vmatpush1.bf16.msra.mxu0 0
    %1802 = vmatprep.subr.bf16.mxu0 0
    %1803 = vmatpush1.bf16.msra.mxu0 0
    %1804 = vmatprep.subr.bf16.mxu0 0
    %1805 = vmatpush1.bf16.msra.mxu0 0
    %1806 = vmatprep.subr.bf16.mxu0 0
    %1807 = vmatpush1.bf16.msra.mxu0 0
    %1808 = vmatprep.subr.bf16.mxu0 0
    %1809 = vmatpush1.bf16.msra.mxu0 0
    %1810 = vmatprep.subr.bf16.mxu0 0
    %1811 = vmatpush1.bf16.msra.mxu0 0
    %1812 = vmatprep.subr.bf16.mxu0 0
    %1813 = vmatpush1.bf16.msra.mxu0 0
    %1814 = vmatprep.subr.bf16.mxu0 0
    %1815 = vmatpush1.bf16.msra.mxu0 0
    %1816 = vmatprep.mubr.bf16.mxu0 0
    %1817 = vmatmul.mubr.bf16.gmra.mrb[0].mxu0 %v1779
    %v1818 = vpop.f32.mrb[0].mxu0
    %v1819 = vadd.f32 %v1750, %v1818
    %v1820 = vpop.f32.mrb[0].mxu0
    %v1821 = vadd.f32 %v1752, %v1820
    %v1822 = vpop.f32.mrb[0].mxu0
    %v1823 = vadd.f32 %v1754, %v1822
    %v1824 = vpop.f32.mrb[0].mxu0
    %v1825 = vadd.f32 %v1756, %v1824
    %1826 = vmatprep.mubr.bf16.mxu0 0
    %1827 = vmatmul.mubr.bf16.gmra.mrb[0].mxu0 %v1782
    %v1828 = vpop.f32.mrb[0].mxu0
    %v1829 = vadd.f32 %v1760, %v1828
    %v1830 = vpop.f32.mrb[0].mxu0
    %v1831 = vadd.f32 %v1762, %v1830
    %v1832 = vpop.f32.mrb[0].mxu0
    %v1833 = vadd.f32 %v1764, %v1832
    %v1834 = vpop.f32.mrb[0].mxu0
    %v1835 = vadd.f32 %v1766, %v1834
    %1836 = vdwg.mxu0
    %v1837 = vld [vmem:[%s2 + $0x108] sm:$0xf]
    %v1838 = vld [vmem:[%s2 + $0x10c] sm:$0xf]
    %v1839 = vld [vmem:[%s2 + $0x110] sm:$0xf]
    %v1840 = vld [vmem:[%s2 + $0x114] sm:$0xf]
    %v1845 = vunpack.c.l.b16 %v1837
    %v1846 = vunpack.c.l.b16 %v1838
    %v1847 = vunpack.c.l.b16 %v1839
    %v1848 = vunpack.c.l.b16 %v1840
    %v1849 = vpack.c.b16 %v1846, %v1845
    %v1850 = vpack.c.b16 %v1848, %v1847
    %v1852 = vsel %vm1115, %v1849, 0
    %v1855 = vsel %vm1115, %v1850, 0
    %1857 = vmatprep.subr.bf16.mxu0 %v1684
    %1858 = vmatpush1.bf16.msra.mxu0 %v1683
    %1859 = vmatprep.subr.bf16.mxu0 %v1686
    %1860 = vmatpush1.bf16.msra.mxu0 %v1685
    %1861 = vmatprep.subr.bf16.mxu0 0
    %1862 = vmatpush1.bf16.msra.mxu0 0
    %1863 = vmatprep.subr.bf16.mxu0 0
    %1864 = vmatpush1.bf16.msra.mxu0 0
    %1865 = vmatprep.subr.bf16.mxu0 0
    %1866 = vmatpush1.bf16.msra.mxu0 0
    %1867 = vmatprep.subr.bf16.mxu0 0
    %1868 = vmatpush1.bf16.msra.mxu0 0
    %1869 = vmatprep.subr.bf16.mxu0 0
    %1870 = vmatpush1.bf16.msra.mxu0 0
    %1871 = vmatprep.subr.bf16.mxu0 0
    %1872 = vmatpush1.bf16.msra.mxu0 0
    %1873 = vmatprep.subr.bf16.mxu0 0
    %1874 = vmatpush1.bf16.msra.mxu0 0
    %1875 = vmatprep.subr.bf16.mxu0 0
    %1876 = vmatpush1.bf16.msra.mxu0 0
    %1877 = vmatprep.subr.bf16.mxu0 0
    %1878 = vmatpush1.bf16.msra.mxu0 0
    %1879 = vmatprep.subr.bf16.mxu0 0
    %1880 = vmatpush1.bf16.msra.mxu0 0
    %1881 = vmatprep.subr.bf16.mxu0 0
    %1882 = vmatpush1.bf16.msra.mxu0 0
    %1883 = vmatprep.subr.bf16.mxu0 0
    %1884 = vmatpush1.bf16.msra.mxu0 0
    %1885 = vmatprep.subr.bf16.mxu0 0
    %1886 = vmatpush1.bf16.msra.mxu0 0
    %1887 = vmatprep.subr.bf16.mxu0 0
    %1888 = vmatpush1.bf16.msra.mxu0 0
    %1889 = vmatprep.mubr.bf16.mxu0 0
    %1890 = vmatmul.mubr.bf16.gmra.mrb[0].mxu0 %v1852
    %v1891 = vpop.f32.mrb[0].mxu0
    %v1892 = vadd.f32 0.0, %v1891
    %v1893 = vpop.f32.mrb[0].mxu0
    %v1894 = vadd.f32 0.0, %v1893
    %v1895 = vpop.f32.mrb[0].mxu0
    %v1896 = vadd.f32 0.0, %v1895
    %v1897 = vpop.f32.mrb[0].mxu0
    %v1898 = vadd.f32 0.0, %v1897
    %1899 = vmatprep.mubr.bf16.mxu0 0
    %1900 = vmatmul.mubr.bf16.gmra.mrb[0].mxu0 %v1855
    %v1901 = vpop.f32.mrb[0].mxu0
    %v1902 = vadd.f32 0.0, %v1901
    %v1903 = vpop.f32.mrb[0].mxu0
    %v1904 = vadd.f32 0.0, %v1903
    %v1905 = vpop.f32.mrb[0].mxu0
    %v1906 = vadd.f32 0.0, %v1905
    %v1907 = vpop.f32.mrb[0].mxu0
    %v1908 = vadd.f32 0.0, %v1907
    %1909 = vdwg.mxu0
    %v1910 = vadd.f32 %v1819, %v1892
    %v1911 = vadd.f32 %v1821, %v1894
    %v1912 = vadd.f32 %v1823, %v1896
    %v1913 = vadd.f32 %v1825, %v1898
    %v1914 = vadd.f32 %v1829, %v1902
    %v1915 = vadd.f32 %v1831, %v1904
    %v1916 = vadd.f32 %v1833, %v1906
    %v1917 = vadd.f32 %v1835, %v1908
    %v1918 = vld [vmem:[%s3 + $0x148] sm:$0xff]
    %v1919 = vld [vmem:[%s3 + $0x150] sm:$0xff]
    %v1920 = vld [vmem:[%s3 + $0x158] sm:$0xff]
    %v1921 = vld [vmem:[%s3 + $0x160] sm:$0xff]
    %1923 = vset.pattern.permute.xlu0 0
    %1924 = vperm.xlu0 %1923, %v1918
    %v1925 = vpop.permute.xlu0 %1924
    %1928 = vset.pattern.permute.xlu0 0
    %1929 = vperm.xlu0 %1928, %v1919
    %v1930 = vpop.permute.xlu0 %1929
    %1933 = vset.pattern.permute.xlu0 0
    %1934 = vperm.xlu0 %1933, %v1920
    %v1935 = vpop.permute.xlu0 %1934
    %1938 = vset.pattern.permute.xlu0 0
    %1939 = vperm.xlu0 %1938, %v1921
    %v1940 = vpop.permute.xlu0 %1939
    %v1942 = vadd.f32 %v1910, %v1925
    %v1943 = vadd.f32 %v1911, %v1925
    %v1944 = vadd.f32 %v1912, %v1930
    %v1945 = vadd.f32 %v1913, %v1930
    %v1946 = vadd.f32 %v1914, %v1935
    %v1947 = vadd.f32 %v1915, %v1935
    %v1948 = vadd.f32 %v1916, %v1940
    %v1949 = vadd.f32 %v1917, %v1940
    %v1950 = vadd.f32 %v1942, %v1944
    %v1951 = vadd.f32 %v1950, %v1946
    %v1952 = vadd.f32 %v1951, %v1948
    %v1953 = vrot.slane %v1952, 4
    %v1954 = vadd.f32 %v1952, %v1953
    %v1955 = vrot.slane %v1954, 2
    %v1956 = vadd.f32 %v1954, %v1955
    %v1957 = vrot.slane %v1956, 1
    %v1958 = vadd.f32 %v1956, %v1957
    %v1959 = vadd.f32 %v1943, %v1945
    %v1960 = vadd.f32 %v1959, %v1947
    %v1961 = vadd.f32 %v1960, %v1949
    %v1962 = vrot.slane %v1961, 4
    %v1963 = vadd.f32 %v1961, %v1962
    %v1964 = vrot.slane %v1963, 2
    %v1965 = vadd.f32 %v1963, %v1964
    %v1966 = vrot.slane %v1965, 1
    %v1967 = vadd.f32 %v1965, %v1966
    %v1968 = vmul.f32 %v1958, %v1380
    %v1969 = vmul.f32 %v1967, %v1380
    %v1970 = vsub.f32 %v1942, %v1968
    %v1971 = vsub.f32 %v1943, %v1969
    %v1972 = vsub.f32 %v1944, %v1968
    %v1973 = vsub.f32 %v1945, %v1969
    %v1974 = vsub.f32 %v1946, %v1968
    %v1975 = vsub.f32 %v1947, %v1969
    %v1976 = vsub.f32 %v1948, %v1968
    %v1977 = vsub.f32 %v1949, %v1969
    %v1978 = vmul.f32 %v1970, %v1970
    %v1979 = vmul.f32 %v1971, %v1971
    %v1980 = vmul.f32 %v1972, %v1972
    %v1981 = vmul.f32 %v1973, %v1973
    %v1982 = vmul.f32 %v1974, %v1974
    %v1983 = vmul.f32 %v1975, %v1975
    %v1984 = vmul.f32 %v1976, %v1976
    %v1985 = vmul.f32 %v1977, %v1977
    %v1986 = vadd.f32 %v1978, %v1980
    %v1987 = vadd.f32 %v1986, %v1982
    %v1988 = vadd.f32 %v1987, %v1984
    %v1989 = vrot.slane %v1988, 4
    %v1990 = vadd.f32 %v1988, %v1989
    %v1991 = vrot.slane %v1990, 2
    %v1992 = vadd.f32 %v1990, %v1991
    %v1993 = vrot.slane %v1992, 1
    %v1994 = vadd.f32 %v1992, %v1993
    %v1995 = vadd.f32 %v1979, %v1981
    %v1996 = vadd.f32 %v1995, %v1983
    %v1997 = vadd.f32 %v1996, %v1985
    %v1998 = vrot.slane %v1997, 4
    %v1999 = vadd.f32 %v1997, %v1998
    %v2000 = vrot.slane %v1999, 2
    %v2001 = vadd.f32 %v1999, %v2000
    %v2002 = vrot.slane %v2001, 1
    %v2003 = vadd.f32 %v2001, %v2002
    %v2004 = vmul.f32 %v1994, %v1380
    %v2005 = vmul.f32 %v2003, %v1380
    %v2006 = vadd.f32 %v2004, 1e-05
    %v2007 = vadd.f32 %v2005, 1e-05
    %v2008 = vrsqrt.pop %v2006
    %v2009 = vrsqrt.pop %v2007
    %v2010 = vmul.f32 %v1970, %v2008
    %v2011 = vmul.f32 %v1971, %v2009
    %v2012 = vmul.f32 %v1972, %v2008
    %v2013 = vmul.f32 %v1973, %v2009
    %v2014 = vmul.f32 %v1974, %v2008
    %v2015 = vmul.f32 %v1975, %v2009
    %v2016 = vmul.f32 %v1976, %v2008
    %v2017 = vmul.f32 %v1977, %v2009
    %v2018 = vmax.f32 %v2010, 0.0
    %v2019 = vmax.f32 %v2011, 0.0
    %v2020 = vmax.f32 %v2012, 0.0
    %v2021 = vmax.f32 %v2013, 0.0
    %v2022 = vmax.f32 %v2014, 0.0
    %v2023 = vmax.f32 %v2015, 0.0
    %v2024 = vmax.f32 %v2016, 0.0
    %v2025 = vmax.f32 %v2017, 0.0
    %v2026 = vld [vmem:[%s2 + $0x118] sm:$0xf]
    %v2027 = vld [vmem:[%s2 + $0x11c] sm:$0xf]
    %v2028 = vld [vmem:[%s2 + $0x120] sm:$0xf]
    %v2029 = vld [vmem:[%s2 + $0x124] sm:$0xf]
    %v2030 = vld [vmem:[%s2 + $0x128] sm:$0xf]
    %v2031 = vld [vmem:[%s2 + $0x12c] sm:$0xf]
    %v2032 = vld [vmem:[%s2 + $0x130] sm:$0xf]
    %v2033 = vld [vmem:[%s2 + $0x134] sm:$0xf]
    %v2034 = vpack.c.bf16 %v2020, %v2018
    %v2035 = vpack.c.bf16 %v2021, %v2019
    %v2036 = vpack.c.bf16 %v2024, %v2022
    %v2037 = vpack.c.bf16 %v2025, %v2023
    %v2038 = vld [vmem:[%s3 + $0x168] sm:$0xff]
    %v2039 = vld [vmem:[%s3 + $0x170] sm:$0xff]
    %v2040 = vld [vmem:[%s3 + $0x178] sm:$0xff]
    %v2041 = vld [vmem:[%s3 + $0x180] sm:$0xff]
    %v2042 = vld [vmem:[%s3 + $0x188] sm:$0xff]
    %v2043 = vld [vmem:[%s3 + $0x190] sm:$0xff]
    %v2044 = vld [vmem:[%s3 + $0x198] sm:$0xff]
    %v2045 = vld [vmem:[%s3 + $0x1a0] sm:$0xff]
    %2047 = vset.pattern.permute.xlu0 0
    %2048 = vperm.xlu0 %2047, %v2038
    %v2049 = vpop.permute.xlu0 %2048
    %2052 = vset.pattern.permute.xlu0 0
    %2053 = vperm.xlu0 %2052, %v2039
    %v2054 = vpop.permute.xlu0 %2053
    %2057 = vset.pattern.permute.xlu0 0
    %2058 = vperm.xlu0 %2057, %v2040
    %v2059 = vpop.permute.xlu0 %2058
    %2062 = vset.pattern.permute.xlu0 0
    %2063 = vperm.xlu0 %2062, %v2041
    %v2064 = vpop.permute.xlu0 %2063
    %2067 = vset.pattern.permute.xlu0 0
    %2068 = vperm.xlu0 %2067, %v2042
    %v2069 = vpop.permute.xlu0 %2068
    %2072 = vset.pattern.permute.xlu0 0
    %2073 = vperm.xlu0 %2072, %v2043
    %v2074 = vpop.permute.xlu0 %2073
    %2077 = vset.pattern.permute.xlu0 0
    %2078 = vperm.xlu0 %2077, %v2044
    %v2079 = vpop.permute.xlu0 %2078
    %2082 = vset.pattern.permute.xlu0 0
    %2083 = vperm.xlu0 %2082, %v2045
    %v2084 = vpop.permute.xlu0 %2083
    %v2094 = vunpack.c.l.b16 %v2026
    %v2095 = vunpack.c.l.b16 %v2027
    %v2096 = vunpack.c.l.b16 %v2028
    %v2097 = vunpack.c.l.b16 %v2029
    %v2098 = vunpack.c.l.b16 %v2030
    %v2099 = vunpack.c.l.b16 %v2031
    %v2100 = vunpack.c.l.b16 %v2032
    %v2101 = vunpack.c.l.b16 %v2033
    %v2102 = vpack.c.b16 %v2095, %v2094
    %v2103 = vpack.c.b16 %v2097, %v2096
    %v2104 = vpack.c.b16 %v2099, %v2098
    %v2105 = vpack.c.b16 %v2101, %v2100
    %v2107 = vsel %vm1115, %v2102, 0
    %v2110 = vsel %vm1115, %v2103, 0
    %v2113 = vsel %vm1115, %v2104, 0
    %v2116 = vsel %vm1115, %v2105, 0
    %2118 = vmatprep.subr.bf16.mxu0 %v2035
    %2119 = vmatpush1.bf16.msra.mxu0 %v2034
    %2120 = vmatprep.subr.bf16.mxu0 %v2037
    %2121 = vmatpush1.bf16.msra.mxu0 %v2036
    %2122 = vmatprep.subr.bf16.mxu0 0
    %2123 = vmatpush1.bf16.msra.mxu0 0
    %2124 = vmatprep.subr.bf16.mxu0 0
    %2125 = vmatpush1.bf16.msra.mxu0 0
    %2126 = vmatprep.subr.bf16.mxu0 0
    %2127 = vmatpush1.bf16.msra.mxu0 0
    %2128 = vmatprep.subr.bf16.mxu0 0
    %2129 = vmatpush1.bf16.msra.mxu0 0
    %2130 = vmatprep.subr.bf16.mxu0 0
    %2131 = vmatpush1.bf16.msra.mxu0 0
    %2132 = vmatprep.subr.bf16.mxu0 0
    %2133 = vmatpush1.bf16.msra.mxu0 0
    %2134 = vmatprep.subr.bf16.mxu0 0
    %2135 = vmatpush1.bf16.msra.mxu0 0
    %2136 = vmatprep.subr.bf16.mxu0 0
    %2137 = vmatpush1.bf16.msra.mxu0 0
    %2138 = vmatprep.subr.bf16.mxu0 0
    %2139 = vmatpush1.bf16.msra.mxu0 0
    %2140 = vmatprep.subr.bf16.mxu0 0
    %2141 = vmatpush1.bf16.msra.mxu0 0
    %2142 = vmatprep.subr.bf16.mxu0 0
    %2143 = vmatpush1.bf16.msra.mxu0 0
    %2144 = vmatprep.subr.bf16.mxu0 0
    %2145 = vmatpush1.bf16.msra.mxu0 0
    %2146 = vmatprep.subr.bf16.mxu0 0
    %2147 = vmatpush1.bf16.msra.mxu0 0
    %2148 = vmatprep.subr.bf16.mxu0 0
    %2149 = vmatpush1.bf16.msra.mxu0 0
    %2150 = vmatprep.mubr.bf16.mxu0 0
    %2151 = vmatmul.mubr.bf16.gmra.mrb[0].mxu0 %v2107
    %v2152 = vpop.f32.mrb[0].mxu0
    %v2153 = vadd.f32 %v2049, %v2152
    %v2154 = vpop.f32.mrb[0].mxu0
    %v2155 = vadd.f32 %v2049, %v2154
    %v2156 = vpop.f32.mrb[0].mxu0
    %v2157 = vadd.f32 %v2054, %v2156
    %v2158 = vpop.f32.mrb[0].mxu0
    %v2159 = vadd.f32 %v2054, %v2158
    %2160 = vmatprep.mubr.bf16.mxu0 0
    %2161 = vmatmul.mubr.bf16.gmra.mrb[0].mxu0 %v2110
    %v2162 = vpop.f32.mrb[0].mxu0
    %v2163 = vadd.f32 %v2059, %v2162
    %v2164 = vpop.f32.mrb[0].mxu0
    %v2165 = vadd.f32 %v2059, %v2164
    %v2166 = vpop.f32.mrb[0].mxu0
    %v2167 = vadd.f32 %v2064, %v2166
    %v2168 = vpop.f32.mrb[0].mxu0
    %v2169 = vadd.f32 %v2064, %v2168
    %2170 = vmatprep.mubr.bf16.mxu0 0
    %2171 = vmatmul.mubr.bf16.gmra.mrb[0].mxu0 %v2113
    %v2172 = vpop.f32.mrb[0].mxu0
    %v2173 = vadd.f32 %v2069, %v2172
    %v2174 = vpop.f32.mrb[0].mxu0
    %v2175 = vadd.f32 %v2069, %v2174
    %v2176 = vpop.f32.mrb[0].mxu0
    %v2177 = vadd.f32 %v2074, %v2176
    %v2178 = vpop.f32.mrb[0].mxu0
    %v2179 = vadd.f32 %v2074, %v2178
    %2180 = vmatprep.mubr.bf16.mxu0 0
    %2181 = vmatmul.mubr.bf16.gmra.mrb[0].mxu0 %v2116
    %v2182 = vpop.f32.mrb[0].mxu0
    %v2183 = vadd.f32 %v2079, %v2182
    %v2184 = vpop.f32.mrb[0].mxu0
    %v2185 = vadd.f32 %v2079, %v2184
    %v2186 = vpop.f32.mrb[0].mxu0
    %v2187 = vadd.f32 %v2084, %v2186
    %v2188 = vpop.f32.mrb[0].mxu0
    %v2189 = vadd.f32 %v2084, %v2188
    %2190 = vdwg.mxu0
    %v2191 = vld [vmem:[%s2 + $0xb8] sm:$0xf]
    %v2192 = vld [vmem:[%s2 + $0xbc] sm:$0xf]
    %v2193 = vld [vmem:[%s2 + $0xc0] sm:$0xf]
    %v2194 = vld [vmem:[%s2 + $0xc4] sm:$0xf]
    %v2195 = vld [vmem:[%s2 + $0xc8] sm:$0xf]
    %v2196 = vld [vmem:[%s2 + $0xcc] sm:$0xf]
    %v2197 = vld [vmem:[%s2 + $0xd0] sm:$0xf]
    %v2198 = vld [vmem:[%s2 + $0xd4] sm:$0xf]
    %v2199 = vld [vmem:[%s3 + $0xe8] sm:$0xff]
    %v2200 = vld [vmem:[%s3 + $0xf0] sm:$0xff]
    %v2201 = vld [vmem:[%s3 + $0xf8] sm:$0xff]
    %v2202 = vld [vmem:[%s3 + $0x100] sm:$0xff]
    %v2203 = vld [vmem:[%s3 + $0x108] sm:$0xff]
    %v2204 = vld [vmem:[%s3 + $0x110] sm:$0xff]
    %v2205 = vld [vmem:[%s3 + $0x118] sm:$0xff]
    %v2206 = vld [vmem:[%s3 + $0x120] sm:$0xff]
    %2208 = vset.pattern.permute.xlu0 0
    %2209 = vperm.xlu0 %2208, %v2199
    %v2210 = vpop.permute.xlu0 %2209
    %2213 = vset.pattern.permute.xlu0 0
    %2214 = vperm.xlu0 %2213, %v2200
    %v2215 = vpop.permute.xlu0 %2214
    %2218 = vset.pattern.permute.xlu0 0
    %2219 = vperm.xlu0 %2218, %v2201
    %v2220 = vpop.permute.xlu0 %2219
    %2223 = vset.pattern.permute.xlu0 0
    %2224 = vperm.xlu0 %2223, %v2202
    %v2225 = vpop.permute.xlu0 %2224
    %2228 = vset.pattern.permute.xlu0 0
    %2229 = vperm.xlu0 %2228, %v2203
    %v2230 = vpop.permute.xlu0 %2229
    %2233 = vset.pattern.permute.xlu0 0
    %2234 = vperm.xlu0 %2233, %v2204
    %v2235 = vpop.permute.xlu0 %2234
    %2238 = vset.pattern.permute.xlu0 0
    %2239 = vperm.xlu0 %2238, %v2205
    %v2240 = vpop.permute.xlu0 %2239
    %2243 = vset.pattern.permute.xlu0 0
    %2244 = vperm.xlu0 %2243, %v2206
    %v2245 = vpop.permute.xlu0 %2244
    %v2255 = vunpack.c.l.b16 %v2191
    %v2256 = vunpack.c.l.b16 %v2192
    %v2257 = vunpack.c.l.b16 %v2193
    %v2258 = vunpack.c.l.b16 %v2194
    %v2259 = vunpack.c.l.b16 %v2195
    %v2260 = vunpack.c.l.b16 %v2196
    %v2261 = vunpack.c.l.b16 %v2197
    %v2262 = vunpack.c.l.b16 %v2198
    %v2263 = vpack.c.b16 %v2256, %v2255
    %v2264 = vpack.c.b16 %v2258, %v2257
    %v2265 = vpack.c.b16 %v2260, %v2259
    %v2266 = vpack.c.b16 %v2262, %v2261
    %v2268 = vsel %vm1115, %v2263, 0
    %v2271 = vsel %vm1115, %v2264, 0
    %v2274 = vsel %vm1115, %v2265, 0
    %v2277 = vsel %vm1115, %v2266, 0
    %2279 = vmatprep.subr.bf16.mxu0 %v1359
    %2280 = vmatpush1.bf16.msra.mxu0 %v1358
    %2281 = vmatprep.subr.bf16.mxu0 %v1361
    %2282 = vmatpush1.bf16.msra.mxu0 %v1360
    %2283 = vmatprep.subr.bf16.mxu0 0
    %2284 = vmatpush1.bf16.msra.mxu0 0
    %2285 = vmatprep.subr.bf16.mxu0 0
    %2286 = vmatpush1.bf16.msra.mxu0 0
    %2287 = vmatprep.subr.bf16.mxu0 0
    %2288 = vmatpush1.bf16.msra.mxu0 0
    %2289 = vmatprep.subr.bf16.mxu0 0
    %2290 = vmatpush1.bf16.msra.mxu0 0
    %2291 = vmatprep.subr.bf16.mxu0 0
    %2292 = vmatpush1.bf16.msra.mxu0 0
    %2293 = vmatprep.subr.bf16.mxu0 0
    %2294 = vmatpush1.bf16.msra.mxu0 0
    %2295 = vmatprep.subr.bf16.mxu0 0
    %2296 = vmatpush1.bf16.msra.mxu0 0
    %2297 = vmatprep.subr.bf16.mxu0 0
    %2298 = vmatpush1.bf16.msra.mxu0 0
    %2299 = vmatprep.subr.bf16.mxu0 0
    %2300 = vmatpush1.bf16.msra.mxu0 0
    %2301 = vmatprep.subr.bf16.mxu0 0
    %2302 = vmatpush1.bf16.msra.mxu0 0
    %2303 = vmatprep.subr.bf16.mxu0 0
    %2304 = vmatpush1.bf16.msra.mxu0 0
    %2305 = vmatprep.subr.bf16.mxu0 0
    %2306 = vmatpush1.bf16.msra.mxu0 0
    %2307 = vmatprep.subr.bf16.mxu0 0
    %2308 = vmatpush1.bf16.msra.mxu0 0
    %2309 = vmatprep.subr.bf16.mxu0 0
    %2310 = vmatpush1.bf16.msra.mxu0 0
    %2311 = vmatprep.mubr.bf16.mxu0 0
    %2312 = vmatmul.mubr.bf16.gmra.mrb[0].mxu0 %v2268
    %v2313 = vpop.f32.mrb[0].mxu0
    %v2314 = vadd.f32 %v2210, %v2313
    %v2315 = vpop.f32.mrb[0].mxu0
    %v2316 = vadd.f32 %v2210, %v2315
    %v2317 = vpop.f32.mrb[0].mxu0
    %v2318 = vadd.f32 %v2215, %v2317
    %v2319 = vpop.f32.mrb[0].mxu0
    %v2320 = vadd.f32 %v2215, %v2319
    %2321 = vmatprep.mubr.bf16.mxu0 0
    %2322 = vmatmul.mubr.bf16.gmra.mrb[0].mxu0 %v2271
    %v2323 = vpop.f32.mrb[0].mxu0
    %v2324 = vadd.f32 %v2220, %v2323
    %v2325 = vpop.f32.mrb[0].mxu0
    %v2326 = vadd.f32 %v2220, %v2325
    %v2327 = vpop.f32.mrb[0].mxu0
    %v2328 = vadd.f32 %v2225, %v2327
    %v2329 = vpop.f32.mrb[0].mxu0
    %v2330 = vadd.f32 %v2225, %v2329
    %2331 = vmatprep.mubr.bf16.mxu0 0
    %2332 = vmatmul.mubr.bf16.gmra.mrb[0].mxu0 %v2274
    %v2333 = vpop.f32.mrb[0].mxu0
    %v2334 = vadd.f32 %v2230, %v2333
    %v2335 = vpop.f32.mrb[0].mxu0
    %v2336 = vadd.f32 %v2230, %v2335
    %v2337 = vpop.f32.mrb[0].mxu0
    %v2338 = vadd.f32 %v2235, %v2337
    %v2339 = vpop.f32.mrb[0].mxu0
    %v2340 = vadd.f32 %v2235, %v2339
    %2341 = vmatprep.mubr.bf16.mxu0 0
    %2342 = vmatmul.mubr.bf16.gmra.mrb[0].mxu0 %v2277
    %v2343 = vpop.f32.mrb[0].mxu0
    %v2344 = vadd.f32 %v2240, %v2343
    %v2345 = vpop.f32.mrb[0].mxu0
    %v2346 = vadd.f32 %v2240, %v2345
    %v2347 = vpop.f32.mrb[0].mxu0
    %v2348 = vadd.f32 %v2245, %v2347
    %v2349 = vpop.f32.mrb[0].mxu0
    %v2350 = vadd.f32 %v2245, %v2349
    %2351 = vdwg.mxu0
    %v2352 = vadd.f32 %v2153, %v2314
    %v2353 = vadd.f32 %v2155, %v2316
    %v2354 = vadd.f32 %v2157, %v2318
    %v2355 = vadd.f32 %v2159, %v2320
    %v2356 = vadd.f32 %v2163, %v2324
    %v2357 = vadd.f32 %v2165, %v2326
    %v2358 = vadd.f32 %v2167, %v2328
    %v2359 = vadd.f32 %v2169, %v2330
    %v2360 = vadd.f32 %v2173, %v2334
    %v2361 = vadd.f32 %v2175, %v2336
    %v2362 = vadd.f32 %v2177, %v2338
    %v2363 = vadd.f32 %v2179, %v2340
    %v2364 = vadd.f32 %v2183, %v2344
    %v2365 = vadd.f32 %v2185, %v2346
    %v2366 = vadd.f32 %v2187, %v2348
    %v2367 = vadd.f32 %v2189, %v2350
    %2368 = vst [vmem:[#allocation4] sm:$0xff] %v2352
    %vm2369 = vcmask 539648
    %2370 = vst.msk [vmem:[#allocation4 + $0x8] sm:$0xff] %vm2369, %v2353
    %2371 = vst [vmem:[#allocation4 + $0x10] sm:$0xff] %v2354
    %2372 = vst.msk [vmem:[#allocation4 + $0x18] sm:$0xff] %vm2369, %v2355
    %2373 = vst [vmem:[#allocation4 + $0x20] sm:$0xff] %v2356
    %2374 = vst.msk [vmem:[#allocation4 + $0x28] sm:$0xff] %vm2369, %v2357
    %2375 = vst [vmem:[#allocation4 + $0x30] sm:$0xff] %v2358
    %2376 = vst.msk [vmem:[#allocation4 + $0x38] sm:$0xff] %vm2369, %v2359
    %2377 = vst [vmem:[#allocation4 + $0x40] sm:$0xff] %v2360
    %2378 = vst.msk [vmem:[#allocation4 + $0x48] sm:$0xff] %vm2369, %v2361
    %2379 = vst [vmem:[#allocation4 + $0x50] sm:$0xff] %v2362
    %2380 = vst.msk [vmem:[#allocation4 + $0x58] sm:$0xff] %vm2369, %v2363
    %2381 = vst [vmem:[#allocation4 + $0x60] sm:$0xff] %v2364
    %2382 = vst.msk [vmem:[#allocation4 + $0x68] sm:$0xff] %vm2369, %v2365
    %2383 = vst [vmem:[#allocation4 + $0x70] sm:$0xff] %v2366
    %2384 = vst.msk [vmem:[#allocation4 + $0x78] sm:$0xff] %vm2369, %v2367
    // Predicated region
    $region18: #{bifusion_forward.1} parent=1 // pred_check
      _
    $region19: #{bifusion_forward.1} parent=1 // pred_check_branch
      %2386 = sbr.rel (0) target = $region21
    $region20: #{bifusion_forward.1} parent=1 // pred_region
      %s2388 = ssub.s32 2048, 2048
      %2389 = vsyncadd [#allocation5], %s2388
      %s2390 = sshll.u32 [#allocation4], 4
      %s2391 = int_to_ptr.vmem [resolvable:$true] %s2390
      %2396 = dma.vmem_to_hbm [thread:$0]  %s2391, 2048, %s4, [#allocation5], 256, 256, 16
    $region21: #{bifusion_forward.1} parent=1 // pred_fallthru
      _
    // Predicated region
    $region22: #{bifusion_forward.1} parent=1 // pred_check
      _
    $region23: #{bifusion_forward.1} parent=1 // pred_check_branch
      %2398 = sbr.rel (0) target = $region25
    $region24: #{bifusion_forward.1} parent=1 // pred_region
      %2399 = dma.done [#allocation5], 2048
    $region25: #{bifusion_forward.1} parent=1 // pred_fallthru
      _
    %2400 = vsyncpa [#allocation5], 1

</llo_original>
